<compile_context>
chip_gen: v7x
topology: tpu7x:2x2x1
jax: 0.10.0
libtpu: 0.0.40
codegen_flags: <defaults>
</compile_context>

<pallas_src>
import jax
import jax.numpy as jnp
import numpy as np
from jax.experimental import pallas as pl
from jax.experimental.pallas import tpu as pltpu

_LANE = 128
_SUBLANE = 8


def _round_up(n, m):
    return ((n + m - 1) // m) * m


def _chip_info():
    """Best-effort TPU generation detection: (vmem_capacity, num_TCs, mxu_align)."""
    vmem_cap = 64 << 20      # conservative default (v7x-sized)
    num_tc = 1
    mxu_align = 256
    kind = ""
    try:
        kind = jax.devices()[0].device_kind.lower()
    except Exception:
        pass
    if ("v5 lite" in kind) or ("v5e" in kind) or ("v5lite" in kind):
        vmem_cap, num_tc, mxu_align = 128 << 20, 1, 128
    elif "v6" in kind:
        vmem_cap, num_tc, mxu_align = 128 << 20, 1, 256
    elif ("v7" in kind) or ("tpu7" in kind) or ("7x" in kind):
        vmem_cap, num_tc, mxu_align = 64 << 20, 2, 256
    try:
        vmem_cap = int(pltpu.get_tpu_info().vmem_capacity_bytes)
    except Exception:
        pass
    return vmem_cap, num_tc, mxu_align


# ----------------------------------------------------------------------------
# Fused kernel: encoder (+ optional decoder) with all weights resident in VMEM
# ----------------------------------------------------------------------------
def _make_ae_kernel(n_enc, n_dec, enc_relu, dec_relu, emit_rec):
    """Kernel factory. refs layout: [enc params..., dec params...(opt), outs...]."""
    n_outs = 2 if emit_rec else 1

    def _stack(h, params, off, n, relu_flags):
        for i in range(n):
            w = params[off + 2 * i][...]
            b = params[off + 2 * i + 1][...].astype(jnp.float32)
            # bf16 x bf16 -> f32 accumulation on the MXU.
            h = jnp.dot(h.astype(w.dtype), w, preferred_element_type=jnp.float32) + b
            if relu_flags[i]:
                h = jnp.maximum(h, 0.0)  # nn.ReLU(True)
            if i < n - 1:
                # bf16 between layers: bit-identical to the next layer's cast,
                # halves the live intermediate's VMEM/vreg footprint.
                h = h.astype(w.dtype)
        return h

    def kernel(x_ref, *refs):
        params = refs[:-n_outs]
        outs = refs[-n_outs:]
        # TODO(synk): nn.Dropout(p=dropout) before the last encoder linear is an
        # identity here (p=0 / eval mode), so it is intentionally omitted.
        h = _stack(x_ref[...], params, 0, n_enc, enc_relu)
        outs[0][...] = h.astype(outs[0].dtype)
        if emit_rec:
            h = _stack(h, params, 2 * n_enc, n_dec, dec_relu)
            outs[1][...] = h.astype(outs[1].dtype)

    return kernel


# ----------------------------------------------------------------------------
# Weight-streaming fallback: one tiled matmul+bias(+ReLU) pallas_call per layer
# ----------------------------------------------------------------------------
def _pick_tile(dim, cands=(512, 256, 128)):
    for c in cands:
        if dim % c == 0:
            return c
    return dim  # all padded widths are multiples of 128, so 128 always divides


def _streamed_linear(x_bf16, w, b, relu, *, out_dtype, vmem_limit):
    M, K = x_bf16.shape
    N = w.shape[1]
    tm = min(_round_up(M, _SUBLANE), 256)
    M_pad = _round_up(M, tm)
    if M_pad != M:
        x_bf16 = jnp.pad(x_bf16, ((0, M_pad - M), (0, 0)))
    tk = _pick_tile(K)
    tn = _pick_tile(N)
    grid = (M_pad // tm, N // tn, K // tk)

    def kernel(x_ref, w_ref, b_ref, o_ref, acc_ref):
        @pl.when(pl.program_id(2) == 0)
        def _():
            acc_ref[...] = jnp.zeros_like(acc_ref)

        acc_ref[...] += jnp.dot(x_ref[...], w_ref[...],
                                preferred_element_type=jnp.float32)

        @pl.when(pl.program_id(2) == pl.num_programs(2) - 1)
        def _():
            r = acc_ref[...] + b_ref[...]
            if relu:
                r = jnp.maximum(r, 0.0)
            o_ref[...] = r.astype(o_ref.dtype)

    out = pl.pallas_call(
        kernel,
        out_shape=jax.ShapeDtypeStruct((M_pad, N), out_dtype),
        grid=grid,
        in_specs=[pl.BlockSpec((tm, tk), lambda i, j, k: (i, k)),
                  pl.BlockSpec((tk, tn), lambda i, j, k: (k, j)),
                  pl.BlockSpec((1, tn), lambda i, j, k: (0, j))],
        out_specs=pl.BlockSpec((tm, tn), lambda i, j, k: (i, j)),
        scratch_shapes=[pltpu.VMEM((tm, tn), jnp.float32)],
        compiler_params=pltpu.CompilerParams(
            dimension_semantics=("parallel", "parallel", "arbitrary"),
            vmem_limit_bytes=int(vmem_limit)),
    )(x_bf16, w, b)
    return out[:M]


def _streamed_mlp(x_bf16, ws, bs, relu_flags, final_dtype, *, vmem_limit):
    h = x_bf16
    n = len(ws)
    for i, (w, b) in enumerate(zip(ws, bs)):
        last = i == n - 1
        h = _streamed_linear(h, w, b, bool(relu_flags[i]),
                             out_dtype=(final_dtype if last else jnp.bfloat16),
                             vmem_limit=vmem_limit)
    return h


# ----------------------------------------------------------------------------
# Wrapper: padding, tiling, path selection
# ----------------------------------------------------------------------------
def autoencoder_forward(
    x,
    enc_w, enc_b, dec_w, dec_b,
    enc_relu, dec_relu,
    decoder=False,
    *,
    param_dtype=jnp.bfloat16,
    tile_b=None,
    max_tile_b=None,
    vmem_budget_bytes=None,
    weight_streaming=None,
):
    """Equivalent of AutoEncoder.forward(x, decoder=...)."""
    B, d_in = x.shape
    d_phi = enc_w[-1].shape[1]
    d_out = dec_w[-1].shape[1]
    use_dec = bool(decoder)
    out_dtype = x.dtype
    out_itemsize = jnp.dtype(out_dtype).itemsize

    vmem_cap, num_tc, mxu_align = _chip_info()
    if vmem_budget_bytes is None:
        # ~80% of physical VMEM: ~102 MiB on 128 MiB chips, ~51 MiB on v7x.
        vmem_budget_bytes = int(vmem_cap * 0.8)
    if max_tile_b is None:
        max_tile_b = 1024 if vmem_cap >= (128 << 20) else 512

    # ----- lane-pad every layer width up to a multiple of 128 ---------------
    enc_dims = [d_in] + [w.shape[1] for w in enc_w]
    dec_dims = [d_phi] + [w.shape[1] for w in dec_w]
    p_enc = [_round_up(d, _LANE) for d in enc_dims]
    p_dec = [_round_up(d, _LANE) for d in dec_dims]

    def _pad_params(ws, bs, pdims, dtype):
        pw, pb = [], []
        for i, (w, b) in enumerate(zip(ws, bs)):
            fi, fo = pdims[i], pdims[i + 1]
            pw.append(jnp.pad(w, ((0, fi - w.shape[0]),
                                  (0, fo - w.shape[1]))).astype(dtype))
            b2 = jnp.asarray(b).reshape(1, -1)
            pb.append(jnp.pad(b2, ((0, 0), (0, fo - b2.shape[1]))).astype(jnp.float32))
        return pw, pb

    enc_wp, enc_bp = _pad_params(enc_w, enc_b, p_enc, param_dtype)
    dec_wp, dec_bp = _pad_params(dec_w, dec_b, p_dec, param_dtype)

    flat_params = []
    for w, b in zip(enc_wp, enc_bp):
        flat_params += [w, b]
    if use_dec:
        for w, b in zip(dec_wp, dec_bp):
            flat_params += [w, b]

    param_bytes = sum(int(np.prod(p.shape)) * jnp.dtype(p.dtype).itemsize
                      for p in flat_params)
    all_widths = p_enc + (p_dec if use_dec else [])
    max_w = max(all_widths)
    out_w_total = p_enc[-1] + (p_dec[-1] if use_dec else 0)

    def _footprint(tb):
        weights = param_bytes                                   # Buffered(1): 1x
        io = 2 * tb * p_enc[0] * 2 + 2 * tb * out_w_total * out_itemsize
        interm = 3 * tb * max_w * 4                             # live f32 h + bf16 copy
        return weights + io + interm + (2 << 20)                # compiler scratch

    # ----- weight-streaming fallback (resident weights can never fit) -------
    if weight_streaming is None:
        weight_streaming = _footprint(_SUBLANE) > vmem_budget_bytes

    if weight_streaming:
        # Per-layer tiled matmuls; inter-layer activations round-trip HBM in bf16.
        B8 = _round_up(B, _SUBLANE)
        xb = jnp.pad(x, ((0, B8 - B), (0, p_enc[0] - d_in))).astype(jnp.bfloat16)
        phi_full = _streamed_mlp(xb, enc_wp, enc_bp, tuple(enc_relu), out_dtype,
                                 vmem_limit=vmem_budget_bytes)
        phi = phi_full[:B, :d_phi]
        if use_dec:
            rec_full = _streamed_mlp(phi_full.astype(jnp.bfloat16), dec_wp, dec_bp,
                                     tuple(dec_relu), out_dtype,
                                     vmem_limit=vmem_budget_bytes)
            return phi, rec_full[:B, :d_out]
        return phi, None

    # ----- fused resident-weight path ----------------------------------------
    if tile_b is None:
        full = _round_up(B, _SUBLANE)
        if full <= max_tile_b:
            tile_b = full                      # small batch: one tile, no per-step cost
            if num_tc >= 2 and B >= 2 * mxu_align:
                # v7x: give both TensorCores a grid step for large batches.
                tile_b = _round_up(-(-B // 2), _SUBLANE)
        else:
            tile_b = max_tile_b                # 512/1024 -> MXU-friendly 256-multiple
    else:
        tile_b = max(_SUBLANE, _round_up(tile_b, _SUBLANE))

    while tile_b > _SUBLANE and _footprint(tile_b) > vmem_budget_bytes:
        tile_b = max(_SUBLANE, _round_up(tile_b // 2, _SUBLANE))

    B_pad = _round_up(B, tile_b)
    # bf16 input: first matmul casts to bf16 anyway -> bit-identical, half the DMA.
    x_p = jnp.pad(x, ((0, B_pad - B), (0, p_enc[0] - d_in))).astype(jnp.bfloat16)
    grid = (B_pad // tile_b,)

    out_shapes = [jax.ShapeDtypeStruct((B_pad, p_enc[-1]), out_dtype)]
    out_specs = [pl.BlockSpec((tile_b, p_enc[-1]), lambda i: (i, 0))]
    if use_dec:
        out_shapes.append(jax.ShapeDtypeStruct((B_pad, p_dec[-1]), out_dtype))
        out_specs.append(pl.BlockSpec((tile_b, p_dec[-1]), lambda i: (i, 0)))

    layer_dims = list(zip(p_enc[:-1], p_enc[1:]))
    if use_dec:
        layer_dims += list(zip(p_dec[:-1], p_dec[1:]))
    flops = 2 * B_pad * sum(a * b for a, b in layer_dims)
    bytes_accessed = (int(np.prod(x_p.shape)) * 2 + param_bytes
                      + sum(int(np.prod(s.shape)) * out_itemsize for s in out_shapes))
    cost = pl.CostEstimate(flops=flops, transcendentals=0,
                           bytes_accessed=bytes_accessed)

    kernel = _make_ae_kernel(len(enc_wp), len(dec_wp) if use_dec else 0,
                             tuple(enc_relu), tuple(dec_relu), use_dec)

    def _call(single_buffer_weights):
        in_specs = [pl.BlockSpec((tile_b, p_enc[0]), lambda i: (i, 0))]
        for p in flat_params:
            if single_buffer_weights:
                # Constant index_map -> fetched once; single buffer halves weight VMEM.
                in_specs.append(pl.BlockSpec(p.shape, lambda i: (0, 0),
                                             pipeline_mode=pl.Buffered(1)))
            else:
                in_specs.append(pl.BlockSpec(p.shape, lambda i: (0, 0)))
        return pl.pallas_call(
            kernel,
            out_shape=tuple(out_shapes),
            grid=grid,
            in_specs=in_specs,
            out_specs=tuple(out_specs),
            compiler_params=pltpu.CompilerParams(
                dimension_semantics=("parallel",),
                vmem_limit_bytes=int(vmem_budget_bytes)),
            cost_estimate=cost,
        )(x_p, *flat_params)

    try:
        outs = _call(True)
    except Exception:
        # Robustness: fall back to default double-buffered weight blocks.
        outs = _call(False)

    phi = outs[0][:B, :d_phi]
    if use_dec:
        return phi, outs[1][:B, :d_out]
    return phi, None


# ----------------------------------------------------------------------------
# Parameter construction (deterministic, mirroring the PyTorch __init__)
# ----------------------------------------------------------------------------
def _kaiming_normal(key, fan_in, fan_out):
    std = np.sqrt(2.0 / fan_in)
    return jax.random.normal(key, (fan_in, fan_out), jnp.float32) * std


def _normal001(key, fan_in, fan_out):
    return jax.random.normal(key, (fan_in, fan_out), jnp.float32) * 0.01


def _bias(key, fan_in, fan_out):
    bound = 1.0 / np.sqrt(fan_in)
    return jax.random.uniform(key, (1, fan_out), jnp.float32,
                              minval=-bound, maxval=bound)


def build_autoencoder_params(key, num_input, num_node, num_feature, num_output):
    """Return (enc_w, enc_b, enc_relu, dec_w, dec_b, dec_relu)."""
    keys = iter(jax.random.split(key, 64))

    enc_w, enc_b = [], []
    if len(num_node) > 0:
        enc_dims = [num_input] + list(num_node) + [num_feature]
        for li in range(len(enc_dims) - 1):
            fi, fo = enc_dims[li], enc_dims[li + 1]
            last = li == len(enc_dims) - 2
            init = _normal001 if last else _kaiming_normal
            enc_w.append(init(next(keys), fi, fo))
            enc_b.append(_bias(next(keys), fi, fo))
        enc_relu = [True] * (len(enc_w) - 1) + [False]
    else:
        enc_w.append(_kaiming_normal(next(keys), num_input, num_feature))
        enc_b.append(_bias(next(keys), num_input, num_feature))
        enc_relu = [True]

    num_dn = list(reversed(num_node))
    dec_w, dec_b = [], []
    if len(num_dn) > 0:
        dec_dims = [num_feature] + num_dn + [num_output]
        for li in range(len(dec_dims) - 1):
            fi, fo = dec_dims[li], dec_dims[li + 1]
            dec_w.append(_kaiming_normal(next(keys), fi, fo))
            dec_b.append(_bias(next(keys), fi, fo))
        dec_relu = [True] * (len(dec_w) - 1) + [False]
    else:
        dec_w.append(_normal001(next(keys), num_feature, num_output))
        dec_b.append(_bias(next(keys), num_feature, num_output))
        dec_relu = [False]

    return enc_w, enc_b, enc_relu, dec_w, dec_b, dec_relu


# ----------------------------------------------------------------------------
# Pure-JAX reference (mirrors the kernel's bf16-matmul / f32-accumulate math)
# ----------------------------------------------------------------------------
def _ref_mlp(x, ws, bs, relu_flags, mm_dtype):
    h = x.astype(jnp.float32)
    for i, (w, b) in enumerate(zip(ws, bs)):
        h = jnp.dot(h.astype(mm_dtype), w.astype(mm_dtype),
                    preferred_element_type=jnp.float32) \
            + b.reshape(1, -1).astype(jnp.float32)
        if relu_flags[i]:
            h = jnp.maximum(h, 0.0)
    return h


if __name__ == "__main__":
    # AutoEncoder(num_input=16, num_node=[32, 16], num_feature=8, num_output=16)
    num_input, num_node, num_feature, num_output = 16, [32, 16], 8, 16
    batch = 32

    key = jax.random.PRNGKey(0)
    k_x, k_p = jax.random.split(key)
    x = jax.random.normal(k_x, (batch, num_input), jnp.float32)

    enc_w, enc_b, enc_relu, dec_w, dec_b, dec_relu = build_autoencoder_params(
        k_p, num_input, num_node, num_feature, num_output)

    phi_ref = _ref_mlp(x, enc_w, enc_b, enc_relu, jnp.bfloat16)
    rec_ref = _ref_mlp(phi_ref, dec_w, dec_b, dec_relu, jnp.bfloat16)

    # --- fused resident-weight path (default) ---
    phi, rec = autoencoder_forward(x, enc_w, enc_b, dec_w, dec_b,
                                   enc_relu, dec_relu, decoder=True)
    phi = jax.block_until_ready(phi)
    rec = jax.block_until_ready(rec)
    assert phi.shape == (batch, num_feature)
    assert rec.shape == (batch, num_output)
    np.testing.assert_allclose(np.asarray(phi), np.asarray(phi_ref),
                               rtol=5e-3, atol=5e-3)
    np.testing.assert_allclose(np.asarray(rec), np.asarray(rec_ref),
                               rtol=5e-3, atol=5e-3)

    # --- weight-streaming fallback path (forced, exercises the large-model path) ---
    phi_s, rec_s = autoencoder_forward(x, enc_w, enc_b, dec_w, dec_b,
                                       enc_relu, dec_relu, decoder=True,
                                       weight_streaming=True)
    phi_s = jax.block_until_ready(phi_s)
    rec_s = jax.block_until_ready(rec_s)
    np.testing.assert_allclose(np.asarray(phi_s), np.asarray(phi_ref),
                               rtol=5e-3, atol=5e-3)
    np.testing.assert_allclose(np.asarray(rec_s), np.asarray(rec_ref),
                               rtol=5e-3, atol=5e-3)

    print("KERNEL_OK")
</pallas_src>

<mosaic_0001>
module attributes {stable_mosaic.version = 11 : i64} {
  func.func @kernel(%arg0: i32, %arg1: memref<32x128xbf16, #tpu.memory_space<vmem>>, %arg2: memref<128x128xbf16, #tpu.memory_space<vmem>>, %arg3: memref<1x128xf32, #tpu.memory_space<vmem>>, %arg4: memref<128x128xbf16, #tpu.memory_space<vmem>>, %arg5: memref<1x128xf32, #tpu.memory_space<vmem>>, %arg6: memref<128x128xbf16, #tpu.memory_space<vmem>>, %arg7: memref<1x128xf32, #tpu.memory_space<vmem>>, %arg8: memref<128x128xbf16, #tpu.memory_space<vmem>>, %arg9: memref<1x128xf32, #tpu.memory_space<vmem>>, %arg10: memref<128x128xbf16, #tpu.memory_space<vmem>>, %arg11: memref<1x128xf32, #tpu.memory_space<vmem>>, %arg12: memref<128x128xbf16, #tpu.memory_space<vmem>>, %arg13: memref<1x128xf32, #tpu.memory_space<vmem>>, %arg14: memref<32x128xf32, #tpu.memory_space<vmem>>, %arg15: memref<32x128xf32, #tpu.memory_space<vmem>>) attributes {dimension_semantics = [#tpu.dimension_semantics<parallel>], iteration_bounds = array<i64: 1>, scalar_prefetch = 0 : i64, scratch_operands = 0 : i64, tpu.core_type = #tpu.core_type<tc>, window_params = [{transform_indices = @transform_0, window_bounds = array<i64: 32, 128>}, {pipeline_mode = #tpu.pipeline_mode<synchronous>, transform_indices = @transform_1, window_bounds = array<i64: 128, 128>}, {pipeline_mode = #tpu.pipeline_mode<synchronous>, transform_indices = @transform_2, window_bounds = array<i64: 1, 128>}, {pipeline_mode = #tpu.pipeline_mode<synchronous>, transform_indices = @transform_3, window_bounds = array<i64: 128, 128>}, {pipeline_mode = #tpu.pipeline_mode<synchronous>, transform_indices = @transform_4, window_bounds = array<i64: 1, 128>}, {pipeline_mode = #tpu.pipeline_mode<synchronous>, transform_indices = @transform_5, window_bounds = array<i64: 128, 128>}, {pipeline_mode = #tpu.pipeline_mode<synchronous>, transform_indices = @transform_6, window_bounds = array<i64: 1, 128>}, {pipeline_mode = #tpu.pipeline_mode<synchronous>, transform_indices = @transform_7, window_bounds = array<i64: 128, 128>}, {pipeline_mode = #tpu.pipeline_mode<synchronous>, transform_indices = @transform_8, window_bounds = array<i64: 1, 128>}, {pipeline_mode = #tpu.pipeline_mode<synchronous>, transform_indices = @transform_9, window_bounds = array<i64: 128, 128>}, {pipeline_mode = #tpu.pipeline_mode<synchronous>, transform_indices = @transform_10, window_bounds = array<i64: 1, 128>}, {pipeline_mode = #tpu.pipeline_mode<synchronous>, transform_indices = @transform_11, window_bounds = array<i64: 128, 128>}, {pipeline_mode = #tpu.pipeline_mode<synchronous>, transform_indices = @transform_12, window_bounds = array<i64: 1, 128>}, {transform_indices = @transform_13, window_bounds = array<i64: 32, 128>}, {transform_indices = @transform_14, window_bounds = array<i64: 32, 128>}]} {
    %c0 = arith.constant 0 : index
    %c0_0 = arith.constant 0 : index
    %0 = vector.load %arg1[%c0, %c0_0] : memref<32x128xbf16, #tpu.memory_space<vmem>>, vector<32x128xbf16>
    %c0_1 = arith.constant 0 : index
    %c0_2 = arith.constant 0 : index
    %1 = vector.load %arg2[%c0_1, %c0_2] : memref<128x128xbf16, #tpu.memory_space<vmem>>, vector<128x128xbf16>
    %c0_3 = arith.constant 0 : index
    %c0_4 = arith.constant 0 : index
    %2 = vector.load %arg3[%c0_3, %c0_4] : memref<1x128xf32, #tpu.memory_space<vmem>>, vector<1x128xf32>
    %cst = arith.constant dense<0.000000e+00> : vector<32x128xf32>
    %3 = tpu.matmul %0, %1, %cst {dimension_numbers = #tpu.dot_dimension_numbers<[1], [0], [0], [1], [0, 0, 1, 1], [], []>} : vector<32x128xbf16>, vector<128x128xbf16>, vector<32x128xf32> -> vector<32x128xf32>
    %4 = vector.broadcast %2 : vector<1x128xf32> to vector<32x128xf32>
    %5 = arith.addf %3, %4 : vector<32x128xf32>
    %cst_5 = arith.constant 0.000000e+00 : f32
    %6 = vector.broadcast %cst_5 : f32 to vector<32x128xf32>
    %7 = arith.maximumf %5, %6 : vector<32x128xf32>
    %8 = arith.truncf %7 : vector<32x128xf32> to vector<32x128xbf16>
    %c0_6 = arith.constant 0 : index
    %c0_7 = arith.constant 0 : index
    %9 = vector.load %arg4[%c0_6, %c0_7] : memref<128x128xbf16, #tpu.memory_space<vmem>>, vector<128x128xbf16>
    %c0_8 = arith.constant 0 : index
    %c0_9 = arith.constant 0 : index
    %10 = vector.load %arg5[%c0_8, %c0_9] : memref<1x128xf32, #tpu.memory_space<vmem>>, vector<1x128xf32>
    %cst_10 = arith.constant dense<0.000000e+00> : vector<32x128xf32>
    %11 = tpu.matmul %8, %9, %cst_10 {dimension_numbers = #tpu.dot_dimension_numbers<[1], [0], [0], [1], [0, 0, 1, 1], [], []>} : vector<32x128xbf16>, vector<128x128xbf16>, vector<32x128xf32> -> vector<32x128xf32>
    %12 = vector.broadcast %10 : vector<1x128xf32> to vector<32x128xf32>
    %13 = arith.addf %11, %12 : vector<32x128xf32>
    %cst_11 = arith.constant 0.000000e+00 : f32
    %14 = vector.broadcast %cst_11 : f32 to vector<32x128xf32>
    %15 = arith.maximumf %13, %14 : vector<32x128xf32>
    %16 = arith.truncf %15 : vector<32x128xf32> to vector<32x128xbf16>
    %c0_12 = arith.constant 0 : index
    %c0_13 = arith.constant 0 : index
    %17 = vector.load %arg6[%c0_12, %c0_13] : memref<128x128xbf16, #tpu.memory_space<vmem>>, vector<128x128xbf16>
    %c0_14 = arith.constant 0 : index
    %c0_15 = arith.constant 0 : index
    %18 = vector.load %arg7[%c0_14, %c0_15] : memref<1x128xf32, #tpu.memory_space<vmem>>, vector<1x128xf32>
    %cst_16 = arith.constant dense<0.000000e+00> : vector<32x128xf32>
    %19 = tpu.matmul %16, %17, %cst_16 {dimension_numbers = #tpu.dot_dimension_numbers<[1], [0], [0], [1], [0, 0, 1, 1], [], []>} : vector<32x128xbf16>, vector<128x128xbf16>, vector<32x128xf32> -> vector<32x128xf32>
    %20 = vector.broadcast %18 : vector<1x128xf32> to vector<32x128xf32>
    %21 = arith.addf %19, %20 : vector<32x128xf32>
    %c0_17 = arith.constant 0 : index
    %c0_18 = arith.constant 0 : index
    %22 = vector.load %arg14[%c0_17, %c0_18] : memref<32x128xf32, #tpu.memory_space<vmem>>, vector<32x128xf32>
    tpu.vector_store %arg14[%c0_17, %c0_18], %21 {strides = array<i32>} : memref<32x128xf32, #tpu.memory_space<vmem>>, vector<32x128xf32>,
    %c0_19 = arith.constant 0 : index
    %c0_20 = arith.constant 0 : index
    %23 = vector.load %arg8[%c0_19, %c0_20] : memref<128x128xbf16, #tpu.memory_space<vmem>>, vector<128x128xbf16>
    %c0_21 = arith.constant 0 : index
    %c0_22 = arith.constant 0 : index
    %24 = vector.load %arg9[%c0_21, %c0_22] : memref<1x128xf32, #tpu.memory_space<vmem>>, vector<1x128xf32>
    %25 = arith.truncf %21 : vector<32x128xf32> to vector<32x128xbf16>
    %cst_23 = arith.constant dense<0.000000e+00> : vector<32x128xf32>
    %26 = tpu.matmul %25, %23, %cst_23 {dimension_numbers = #tpu.dot_dimension_numbers<[1], [0], [0], [1], [0, 0, 1, 1], [], []>} : vector<32x128xbf16>, vector<128x128xbf16>, vector<32x128xf32> -> vector<32x128xf32>
    %27 = vector.broadcast %24 : vector<1x128xf32> to vector<32x128xf32>
    %28 = arith.addf %26, %27 : vector<32x128xf32>
    %cst_24 = arith.constant 0.000000e+00 : f32
    %29 = vector.broadcast %cst_24 : f32 to vector<32x128xf32>
    %30 = arith.maximumf %28, %29 : vector<32x128xf32>
    %31 = arith.truncf %30 : vector<32x128xf32> to vector<32x128xbf16>
    %c0_25 = arith.constant 0 : index
    %c0_26 = arith.constant 0 : index
    %32 = vector.load %arg10[%c0_25, %c0_26] : memref<128x128xbf16, #tpu.memory_space<vmem>>, vector<128x128xbf16>
    %c0_27 = arith.constant 0 : index
    %c0_28 = arith.constant 0 : index
    %33 = vector.load %arg11[%c0_27, %c0_28] : memref<1x128xf32, #tpu.memory_space<vmem>>, vector<1x128xf32>
    %cst_29 = arith.constant dense<0.000000e+00> : vector<32x128xf32>
    %34 = tpu.matmul %31, %32, %cst_29 {dimension_numbers = #tpu.dot_dimension_numbers<[1], [0], [0], [1], [0, 0, 1, 1], [], []>} : vector<32x128xbf16>, vector<128x128xbf16>, vector<32x128xf32> -> vector<32x128xf32>
    %35 = vector.broadcast %33 : vector<1x128xf32> to vector<32x128xf32>
    %36 = arith.addf %34, %35 : vector<32x128xf32>
    %cst_30 = arith.constant 0.000000e+00 : f32
    %37 = vector.broadcast %cst_30 : f32 to vector<32x128xf32>
    %38 = arith.maximumf %36, %37 : vector<32x128xf32>
    %39 = arith.truncf %38 : vector<32x128xf32> to vector<32x128xbf16>
    %c0_31 = arith.constant 0 : index
    %c0_32 = arith.constant 0 : index
    %40 = vector.load %arg12[%c0_31, %c0_32] : memref<128x128xbf16, #tpu.memory_space<vmem>>, vector<128x128xbf16>
    %c0_33 = arith.constant 0 : index
    %c0_34 = arith.constant 0 : index
    %41 = vector.load %arg13[%c0_33, %c0_34] : memref<1x128xf32, #tpu.memory_space<vmem>>, vector<1x128xf32>
    %cst_35 = arith.constant dense<0.000000e+00> : vector<32x128xf32>
    %42 = tpu.matmul %39, %40, %cst_35 {dimension_numbers = #tpu.dot_dimension_numbers<[1], [0], [0], [1], [0, 0, 1, 1], [], []>} : vector<32x128xbf16>, vector<128x128xbf16>, vector<32x128xf32> -> vector<32x128xf32>
    %43 = vector.broadcast %41 : vector<1x128xf32> to vector<32x128xf32>
    %44 = arith.addf %42, %43 : vector<32x128xf32>
    %c0_36 = arith.constant 0 : index
    %c0_37 = arith.constant 0 : index
    %45 = vector.load %arg15[%c0_36, %c0_37] : memref<32x128xf32, #tpu.memory_space<vmem>>, vector<32x128xf32>
    tpu.vector_store %arg15[%c0_36, %c0_37], %44 {strides = array<i32>} : memref<32x128xf32, #tpu.memory_space<vmem>>, vector<32x128xf32>,
    return
  }
  func.func @transform_0(%arg0: i32) -> (i32, i32) {
    %c0_i32 = arith.constant 0 : i32
    %c0_i32_0 = arith.constant 0 : i32
    return %arg0, %c0_i32 : i32, i32
  }
  func.func @transform_1(%arg0: i32) -> (i32, i32) {
    %c0_i32 = arith.constant 0 : i32
    %c0_i32_0 = arith.constant 0 : i32
    %c0_i32_1 = arith.constant 0 : i32
    return %c0_i32, %c0_i32_0 : i32, i32
  }
  func.func @transform_2(%arg0: i32) -> (i32, i32) {
    %c0_i32 = arith.constant 0 : i32
    %c0_i32_0 = arith.constant 0 : i32
    %c0_i32_1 = arith.constant 0 : i32
    return %c0_i32, %c0_i32_0 : i32, i32
  }
  func.func @transform_3(%arg0: i32) -> (i32, i32) {
    %c0_i32 = arith.constant 0 : i32
    %c0_i32_0 = arith.constant 0 : i32
    %c0_i32_1 = arith.constant 0 : i32
    return %c0_i32, %c0_i32_0 : i32, i32
  }
  func.func @transform_4(%arg0: i32) -> (i32, i32) {
    %c0_i32 = arith.constant 0 : i32
    %c0_i32_0 = arith.constant 0 : i32
    %c0_i32_1 = arith.constant 0 : i32
    return %c0_i32, %c0_i32_0 : i32, i32
  }
  func.func @transform_5(%arg0: i32) -> (i32, i32) {
    %c0_i32 = arith.constant 0 : i32
    %c0_i32_0 = arith.constant 0 : i32
    %c0_i32_1 = arith.constant 0 : i32
    return %c0_i32, %c0_i32_0 : i32, i32
  }
  func.func @transform_6(%arg0: i32) -> (i32, i32) {
    %c0_i32 = arith.constant 0 : i32
    %c0_i32_0 = arith.constant 0 : i32
    %c0_i32_1 = arith.constant 0 : i32
    return %c0_i32, %c0_i32_0 : i32, i32
  }
  func.func @transform_7(%arg0: i32) -> (i32, i32) {
    %c0_i32 = arith.constant 0 : i32
    %c0_i32_0 = arith.constant 0 : i32
    %c0_i32_1 = arith.constant 0 : i32
    return %c0_i32, %c0_i32_0 : i32, i32
  }
  func.func @transform_8(%arg0: i32) -> (i32, i32) {
    %c0_i32 = arith.constant 0 : i32
    %c0_i32_0 = arith.constant 0 : i32
    %c0_i32_1 = arith.constant 0 : i32
    return %c0_i32, %c0_i32_0 : i32, i32
  }
  func.func @transform_9(%arg0: i32) -> (i32, i32) {
    %c0_i32 = arith.constant 0 : i32
    %c0_i32_0 = arith.constant 0 : i32
    %c0_i32_1 = arith.constant 0 : i32
    return %c0_i32, %c0_i32_0 : i32, i32
  }
  func.func @transform_10(%arg0: i32) -> (i32, i32) {
    %c0_i32 = arith.constant 0 : i32
    %c0_i32_0 = arith.constant 0 : i32
    %c0_i32_1 = arith.constant 0 : i32
    return %c0_i32, %c0_i32_0 : i32, i32
  }
  func.func @transform_11(%arg0: i32) -> (i32, i32) {
    %c0_i32 = arith.constant 0 : i32
    %c0_i32_0 = arith.constant 0 : i32
    %c0_i32_1 = arith.constant 0 : i32
    return %c0_i32, %c0_i32_0 : i32, i32
  }
  func.func @transform_12(%arg0: i32) -> (i32, i32) {
    %c0_i32 = arith.constant 0 : i32
    %c0_i32_0 = arith.constant 0 : i32
    %c0_i32_1 = arith.constant 0 : i32
    return %c0_i32, %c0_i32_0 : i32, i32
  }
  func.func @transform_13(%arg0: i32) -> (i32, i32) {
    %c0_i32 = arith.constant 0 : i32
    %c0_i32_0 = arith.constant 0 : i32
    return %arg0, %c0_i32 : i32, i32
  }
  func.func @transform_14(%arg0: i32) -> (i32, i32) {
    %c0_i32 = arith.constant 0 : i32
    %c0_i32_0 = arith.constant 0 : i32
    return %arg0, %c0_i32 : i32, i32
  }
}

module attributes {stable_mosaic.version = 11 : i64} {
  func.func @kernel(%arg0: i32, %arg1: memref<32x128xbf16, #tpu.memory_space<vmem>>, %arg2: memref<128x128xbf16, #tpu.memory_space<vmem>>, %arg3: memref<1x128xf32, #tpu.memory_space<vmem>>, %arg4: memref<128x128xbf16, #tpu.memory_space<vmem>>, %arg5: memref<1x128xf32, #tpu.memory_space<vmem>>, %arg6: memref<128x128xbf16, #tpu.memory_space<vmem>>, %arg7: memref<1x128xf32, #tpu.memory_space<vmem>>, %arg8: memref<128x128xbf16, #tpu.memory_space<vmem>>, %arg9: memref<1x128xf32, #tpu.memory_space<vmem>>, %arg10: memref<128x128xbf16, #tpu.memory_space<vmem>>, %arg11: memref<1x128xf32, #tpu.memory_space<vmem>>, %arg12: memref<128x128xbf16, #tpu.memory_space<vmem>>, %arg13: memref<1x128xf32, #tpu.memory_space<vmem>>, %arg14: memref<32x128xf32, #tpu.memory_space<vmem>>, %arg15: memref<32x128xf32, #tpu.memory_space<vmem>>) attributes {dimension_semantics = [#tpu.dimension_semantics<parallel>], iteration_bounds = array<i64: 1>, scalar_prefetch = 0 : i64, scratch_operands = 0 : i64, tpu.core_type = #tpu.core_type<tc>, window_params = [{transform_indices = @transform_0, window_bounds = array<i64: 32, 128>}, {pipeline_mode = #tpu.pipeline_mode<synchronous>, transform_indices = @transform_1, window_bounds = array<i64: 128, 128>}, {pipeline_mode = #tpu.pipeline_mode<synchronous>, transform_indices = @transform_2, window_bounds = array<i64: 1, 128>}, {pipeline_mode = #tpu.pipeline_mode<synchronous>, transform_indices = @transform_3, window_bounds = array<i64: 128, 128>}, {pipeline_mode = #tpu.pipeline_mode<synchronous>, transform_indices = @transform_4, window_bounds = array<i64: 1, 128>}, {pipeline_mode = #tpu.pipeline_mode<synchronous>, transform_indices = @transform_5, window_bounds = array<i64: 128, 128>}, {pipeline_mode = #tpu.pipeline_mode<synchronous>, transform_indices = @transform_6, window_bounds = array<i64: 1, 128>}, {pipeline_mode = #tpu.pipeline_mode<synchronous>, transform_indices = @transform_7, window_bounds = array<i64: 128, 128>}, {pipeline_mode = #tpu.pipeline_mode<synchronous>, transform_indices = @transform_8, window_bounds = array<i64: 1, 128>}, {pipeline_mode = #tpu.pipeline_mode<synchronous>, transform_indices = @transform_9, window_bounds = array<i64: 128, 128>}, {pipeline_mode = #tpu.pipeline_mode<synchronous>, transform_indices = @transform_10, window_bounds = array<i64: 1, 128>}, {pipeline_mode = #tpu.pipeline_mode<synchronous>, transform_indices = @transform_11, window_bounds = array<i64: 128, 128>}, {pipeline_mode = #tpu.pipeline_mode<synchronous>, transform_indices = @transform_12, window_bounds = array<i64: 1, 128>}, {transform_indices = @transform_13, window_bounds = array<i64: 32, 128>}, {transform_indices = @transform_14, window_bounds = array<i64: 32, 128>}]} {
    %c0 = arith.constant 0 : index
    %c0_0 = arith.constant 0 : index
    %0 = vector.load %arg1[%c0, %c0_0] : memref<32x128xbf16, #tpu.memory_space<vmem>>, vector<32x128xbf16>
    %c0_1 = arith.constant 0 : index
    %c0_2 = arith.constant 0 : index
    %1 = vector.load %arg2[%c0_1, %c0_2] : memref<128x128xbf16, #tpu.memory_space<vmem>>, vector<128x128xbf16>
    %c0_3 = arith.constant 0 : index
    %c0_4 = arith.constant 0 : index
    %2 = vector.load %arg3[%c0_3, %c0_4] : memref<1x128xf32, #tpu.memory_space<vmem>>, vector<1x128xf32>
    %cst = arith.constant dense<0.000000e+00> : vector<32x128xf32>
    %3 = tpu.matmul %0, %1, %cst {dimension_numbers = #tpu.dot_dimension_numbers<[1], [0], [0], [1], [0, 0, 1, 1], [], []>} : vector<32x128xbf16>, vector<128x128xbf16>, vector<32x128xf32> -> vector<32x128xf32>
    %4 = vector.broadcast %2 : vector<1x128xf32> to vector<32x128xf32>
    %5 = arith.addf %3, %4 : vector<32x128xf32>
    %cst_5 = arith.constant 0.000000e+00 : f32
    %6 = vector.broadcast %cst_5 : f32 to vector<32x128xf32>
    %7 = arith.maximumf %5, %6 : vector<32x128xf32>
    %8 = arith.truncf %7 : vector<32x128xf32> to vector<32x128xbf16>
    %c0_6 = arith.constant 0 : index
    %c0_7 = arith.constant 0 : index
    %9 = vector.load %arg4[%c0_6, %c0_7] : memref<128x128xbf16, #tpu.memory_space<vmem>>, vector<128x128xbf16>
    %c0_8 = arith.constant 0 : index
    %c0_9 = arith.constant 0 : index
    %10 = vector.load %arg5[%c0_8, %c0_9] : memref<1x128xf32, #tpu.memory_space<vmem>>, vector<1x128xf32>
    %cst_10 = arith.constant dense<0.000000e+00> : vector<32x128xf32>
    %11 = tpu.matmul %8, %9, %cst_10 {dimension_numbers = #tpu.dot_dimension_numbers<[1], [0], [0], [1], [0, 0, 1, 1], [], []>} : vector<32x128xbf16>, vector<128x128xbf16>, vector<32x128xf32> -> vector<32x128xf32>
    %12 = vector.broadcast %10 : vector<1x128xf32> to vector<32x128xf32>
    %13 = arith.addf %11, %12 : vector<32x128xf32>
    %cst_11 = arith.constant 0.000000e+00 : f32
    %14 = vector.broadcast %cst_11 : f32 to vector<32x128xf32>
    %15 = arith.maximumf %13, %14 : vector<32x128xf32>
    %16 = arith.truncf %15 : vector<32x128xf32> to vector<32x128xbf16>
    %c0_12 = arith.constant 0 : index
    %c0_13 = arith.constant 0 : index
    %17 = vector.load %arg6[%c0_12, %c0_13] : memref<128x128xbf16, #tpu.memory_space<vmem>>, vector<128x128xbf16>
    %c0_14 = arith.constant 0 : index
    %c0_15 = arith.constant 0 : index
    %18 = vector.load %arg7[%c0_14, %c0_15] : memref<1x128xf32, #tpu.memory_space<vmem>>, vector<1x128xf32>
    %cst_16 = arith.constant dense<0.000000e+00> : vector<32x128xf32>
    %19 = tpu.matmul %16, %17, %cst_16 {dimension_numbers = #tpu.dot_dimension_numbers<[1], [0], [0], [1], [0, 0, 1, 1], [], []>} : vector<32x128xbf16>, vector<128x128xbf16>, vector<32x128xf32> -> vector<32x128xf32>
    %20 = vector.broadcast %18 : vector<1x128xf32> to vector<32x128xf32>
    %21 = arith.addf %19, %20 : vector<32x128xf32>
    %c0_17 = arith.constant 0 : index
    %c0_18 = arith.constant 0 : index
    %22 = vector.load %arg14[%c0_17, %c0_18] : memref<32x128xf32, #tpu.memory_space<vmem>>, vector<32x128xf32>
    tpu.vector_store %arg14[%c0_17, %c0_18], %21 {strides = array<i32>} : memref<32x128xf32, #tpu.memory_space<vmem>>, vector<32x128xf32>,
    %c0_19 = arith.constant 0 : index
    %c0_20 = arith.constant 0 : index
    %23 = vector.load %arg8[%c0_19, %c0_20] : memref<128x128xbf16, #tpu.memory_space<vmem>>, vector<128x128xbf16>
    %c0_21 = arith.constant 0 : index
    %c0_22 = arith.constant 0 : index
    %24 = vector.load %arg9[%c0_21, %c0_22] : memref<1x128xf32, #tpu.memory_space<vmem>>, vector<1x128xf32>
    %25 = arith.truncf %21 : vector<32x128xf32> to vector<32x128xbf16>
    %cst_23 = arith.constant dense<0.000000e+00> : vector<32x128xf32>
    %26 = tpu.matmul %25, %23, %cst_23 {dimension_numbers = #tpu.dot_dimension_numbers<[1], [0], [0], [1], [0, 0, 1, 1], [], []>} : vector<32x128xbf16>, vector<128x128xbf16>, vector<32x128xf32> -> vector<32x128xf32>
    %27 = vector.broadcast %24 : vector<1x128xf32> to vector<32x128xf32>
    %28 = arith.addf %26, %27 : vector<32x128xf32>
    %cst_24 = arith.constant 0.000000e+00 : f32
    %29 = vector.broadcast %cst_24 : f32 to vector<32x128xf32>
    %30 = arith.maximumf %28, %29 : vector<32x128xf32>
    %31 = arith.truncf %30 : vector<32x128xf32> to vector<32x128xbf16>
    %c0_25 = arith.constant 0 : index
    %c0_26 = arith.constant 0 : index
    %32 = vector.load %arg10[%c0_25, %c0_26] : memref<128x128xbf16, #tpu.memory_space<vmem>>, vector<128x128xbf16>
    %c0_27 = arith.constant 0 : index
    %c0_28 = arith.constant 0 : index
    %33 = vector.load %arg11[%c0_27, %c0_28] : memref<1x128xf32, #tpu.memory_space<vmem>>, vector<1x128xf32>
    %cst_29 = arith.constant dense<0.000000e+00> : vector<32x128xf32>
    %34 = tpu.matmul %31, %32, %cst_29 {dimension_numbers = #tpu.dot_dimension_numbers<[1], [0], [0], [1], [0, 0, 1, 1], [], []>} : vector<32x128xbf16>, vector<128x128xbf16>, vector<32x128xf32> -> vector<32x128xf32>
    %35 = vector.broadcast %33 : vector<1x128xf32> to vector<32x128xf32>
    %36 = arith.addf %34, %35 : vector<32x128xf32>
    %cst_30 = arith.constant 0.000000e+00 : f32
    %37 = vector.broadcast %cst_30 : f32 to vector<32x128xf32>
    %38 = arith.maximumf %36, %37 : vector<32x128xf32>
    %39 = arith.truncf %38 : vector<32x128xf32> to vector<32x128xbf16>
    %c0_31 = arith.constant 0 : index
    %c0_32 = arith.constant 0 : index
    %40 = vector.load %arg12[%c0_31, %c0_32] : memref<128x128xbf16, #tpu.memory_space<vmem>>, vector<128x128xbf16>
    %c0_33 = arith.constant 0 : index
    %c0_34 = arith.constant 0 : index
    %41 = vector.load %arg13[%c0_33, %c0_34] : memref<1x128xf32, #tpu.memory_space<vmem>>, vector<1x128xf32>
    %cst_35 = arith.constant dense<0.000000e+00> : vector<32x128xf32>
    %42 = tpu.matmul %39, %40, %cst_35 {dimension_numbers = #tpu.dot_dimension_numbers<[1], [0], [0], [1], [0, 0, 1, 1], [], []>} : vector<32x128xbf16>, vector<128x128xbf16>, vector<32x128xf32> -> vector<32x128xf32>
    %43 = vector.broadcast %41 : vector<1x128xf32> to vector<32x128xf32>
    %44 = arith.addf %42, %43 : vector<32x128xf32>
    %c0_36 = arith.constant 0 : index
    %c0_37 = arith.constant 0 : index
    %45 = vector.load %arg15[%c0_36, %c0_37] : memref<32x128xf32, #tpu.memory_space<vmem>>, vector<32x128xf32>
    tpu.vector_store %arg15[%c0_36, %c0_37], %44 {strides = array<i32>} : memref<32x128xf32, #tpu.memory_space<vmem>>, vector<32x128xf32>,
    return
  }
  func.func @transform_0(%arg0: i32) -> (i32, i32) {
    %c0_i32 = arith.constant 0 : i32
    %c0_i32_0 = arith.constant 0 : i32
    return %arg0, %c0_i32 : i32, i32
  }
  func.func @transform_1(%arg0: i32) -> (i32, i32) {
    %c0_i32 = arith.constant 0 : i32
    %c0_i32_0 = arith.constant 0 : i32
    %c0_i32_1 = arith.constant 0 : i32
    return %c0_i32, %c0_i32_0 : i32, i32
  }
  func.func @transform_2(%arg0: i32) -> (i32, i32) {
    %c0_i32 = arith.constant 0 : i32
    %c0_i32_0 = arith.constant 0 : i32
    %c0_i32_1 = arith.constant 0 : i32
    return %c0_i32, %c0_i32_0 : i32, i32
  }
  func.func @transform_3(%arg0: i32) -> (i32, i32) {
    %c0_i32 = arith.constant 0 : i32
    %c0_i32_0 = arith.constant 0 : i32
    %c0_i32_1 = arith.constant 0 : i32
    return %c0_i32, %c0_i32_0 : i32, i32
  }
  func.func @transform_4(%arg0: i32) -> (i32, i32) {
    %c0_i32 = arith.constant 0 : i32
    %c0_i32_0 = arith.constant 0 : i32
    %c0_i32_1 = arith.constant 0 : i32
    return %c0_i32, %c0_i32_0 : i32, i32
  }
  func.func @transform_5(%arg0: i32) -> (i32, i32) {
    %c0_i32 = arith.constant 0 : i32
    %c0_i32_0 = arith.constant 0 : i32
    %c0_i32_1 = arith.constant 0 : i32
    return %c0_i32, %c0_i32_0 : i32, i32
  }
  func.func @transform_6(%arg0: i32) -> (i32, i32) {
    %c0_i32 = arith.constant 0 : i32
    %c0_i32_0 = arith.constant 0 : i32
    %c0_i32_1 = arith.constant 0 : i32
    return %c0_i32, %c0_i32_0 : i32, i32
  }
  func.func @transform_7(%arg0: i32) -> (i32, i32) {
    %c0_i32 = arith.constant 0 : i32
    %c0_i32_0 = arith.constant 0 : i32
    %c0_i32_1 = arith.constant 0 : i32
    return %c0_i32, %c0_i32_0 : i32, i32
  }
  func.func @transform_8(%arg0: i32) -> (i32, i32) {
    %c0_i32 = arith.constant 0 : i32
    %c0_i32_0 = arith.constant 0 : i32
    %c0_i32_1 = arith.constant 0 : i32
    return %c0_i32, %c0_i32_0 : i32, i32
  }
  func.func @transform_9(%arg0: i32) -> (i32, i32) {
    %c0_i32 = arith.constant 0 : i32
    %c0_i32_0 = arith.constant 0 : i32
    %c0_i32_1 = arith.constant 0 : i32
    return %c0_i32, %c0_i32_0 : i32, i32
  }
  func.func @transform_10(%arg0: i32) -> (i32, i32) {
    %c0_i32 = arith.constant 0 : i32
    %c0_i32_0 = arith.constant 0 : i32
    %c0_i32_1 = arith.constant 0 : i32
    return %c0_i32, %c0_i32_0 : i32, i32
  }
  func.func @transform_11(%arg0: i32) -> (i32, i32) {
    %c0_i32 = arith.constant 0 : i32
    %c0_i32_0 = arith.constant 0 : i32
    %c0_i32_1 = arith.constant 0 : i32
    return %c0_i32, %c0_i32_0 : i32, i32
  }
  func.func @transform_12(%arg0: i32) -> (i32, i32) {
    %c0_i32 = arith.constant 0 : i32
    %c0_i32_0 = arith.constant 0 : i32
    %c0_i32_1 = arith.constant 0 : i32
    return %c0_i32, %c0_i32_0 : i32, i32
  }
  func.func @transform_13(%arg0: i32) -> (i32, i32) {
    %c0_i32 = arith.constant 0 : i32
    %c0_i32_0 = arith.constant 0 : i32
    return %arg0, %c0_i32 : i32, i32
  }
  func.func @transform_14(%arg0: i32) -> (i32, i32) {
    %c0_i32 = arith.constant 0 : i32
    %c0_i32_0 = arith.constant 0 : i32
    return %arg0, %c0_i32 : i32, i32
  }
}

</mosaic_0001>

<llo_original>
// kernel: tpu_custom_call.1
$region0: #{tpu_custom_call.1}
  #allocation0 [shape = 'u32[]', space=smem, size = 0x4, offset = 0x4, fixed_abs, tag = 'smem constant byte address 0x4 - core index']
  #allocation1 [shape = 'u32[144,128]{1,0:T(1,128)}', space=vmem, size = 0x12000, scoped, tag = 'internal scratch']
  %s0 = inlined_call_operand.hbm [shape: bf16[32,128], index: 0, kind: input, shape index: {}]
  %s1 = inlined_call_operand.hbm [shape: bf16[128,128], index: 1, kind: input, shape index: {}]
  %s2 = inlined_call_operand.vmem [shape: f32[1,128], index: 2, kind: input, shape index: {}]
  %s3 = inlined_call_operand.hbm [shape: bf16[128,128], index: 3, kind: input, shape index: {}]
  %s4 = inlined_call_operand.vmem [shape: f32[1,128], index: 4, kind: input, shape index: {}]
  %s5 = inlined_call_operand.hbm [shape: bf16[128,128], index: 5, kind: input, shape index: {}]
  %s6 = inlined_call_operand.vmem [shape: f32[1,128], index: 6, kind: input, shape index: {}]
  %s7 = inlined_call_operand.hbm [shape: bf16[128,128], index: 7, kind: input, shape index: {}]
  %s8 = inlined_call_operand.vmem [shape: f32[1,128], index: 8, kind: input, shape index: {}]
  %s9 = inlined_call_operand.hbm [shape: bf16[128,128], index: 9, kind: input, shape index: {}]
  %s10 = inlined_call_operand.vmem [shape: f32[1,128], index: 10, kind: input, shape index: {}]
  %s11 = inlined_call_operand.hbm [shape: bf16[128,128], index: 11, kind: input, shape index: {}]
  %s12 = inlined_call_operand.vmem [shape: f32[1,128], index: 12, kind: input, shape index: {}]
  %s13 = inlined_call_operand.hbm [shape: f32[32,128], index: 13, kind: output, shape index: {0}]
  %s14 = inlined_call_operand.hbm [shape: f32[32,128], index: 14, kind: output, shape index: {1}]
  %15 = xla_tuple %s13, %s14
  %s16 = sld [smem:[#allocation0]]
  $region98: #{tpu_custom_call.1} parent=0
    _
  %s18 = ssub.s32 1, %s16
  %s19 = scalar_select 0, %s18, %s16
  $region1: #{tpu_custom_call.1} parent=0
    #allocation2 [shape = 'u8[8192]{0}', space=vmem, size = 0x2000, scoped, tag = 'input window, operand 0, single buffered']
    #allocation3 [shape = 's32[1]{0}', space=sflag, size = 0x4, scoped, tag = 'scoped memory for tpu_custom_call.1']
    #allocation4 [shape = 's32[1]{0}', space=sflag, size = 0x4, scoped, tag = 'scoped memory for tpu_custom_call.1']
    #allocation5 [shape = 'u8[32768]{0}', space=vmem, size = 0x8000, scoped, tag = 'input window, operand 1, single buffered']
    #allocation6 [shape = 's32[1]{0}', space=sflag, size = 0x4, scoped, tag = 'scoped memory for tpu_custom_call.1']
    #allocation7 [shape = 'u8[32768]{0}', space=vmem, size = 0x8000, scoped, tag = 'input window, operand 3, single buffered']
    #allocation8 [shape = 'u8[32768]{0}', space=vmem, size = 0x8000, scoped, tag = 'input window, operand 5, single buffered']
    #allocation9 [shape = 's32[1]{0}', space=sflag, size = 0x4, scoped, tag = 'scoped memory for tpu_custom_call.1']
    #allocation10 [shape = 'u8[32768]{0}', space=vmem, size = 0x8000, scoped, tag = 'input window, operand 7, single buffered']
    #allocation11 [shape = 'u8[32768]{0}', space=vmem, size = 0x8000, scoped, tag = 'input window, operand 9, single buffered']
    #allocation12 [shape = 's32[1]{0}', space=sflag, size = 0x4, scoped, tag = 'scoped memory for tpu_custom_call.1']
    #allocation13 [shape = 'u8[32768]{0}', space=vmem, size = 0x8000, scoped, tag = 'input window, operand 11, single buffered']
    #allocation14 [shape = 'u8[16384]{0}', space=vmem, size = 0x4000, scoped, tag = 'output window, operand 0, single buffered']
    #allocation15 [shape = 'u8[16384]{0}', space=vmem, size = 0x4000, scoped, tag = 'output window, operand 1, single buffered']
    #allocation16 [shape = 's32[1]{0}', space=sflag, size = 0x4, scoped, tag = 'scoped memory for tpu_custom_call.1']
    %20 = vsyncpa [#allocation3], 0
    %21 = vsyncpa [#allocation6], 0
    %22 = vsyncpa [#allocation9], 0
    %23 = vsyncpa [#allocation12], 0
    %24 = vsyncpa [#allocation4], 0
    %25 = vsyncpa [#allocation16], 0
    // Predicated region
    $region2: #{tpu_custom_call.1} parent=1 // pred_check
      _
    $region3: #{tpu_custom_call.1} parent=1 // pred_check_branch
      %27 = sbr.rel (0) target = $region5
    $region4: #{tpu_custom_call.1} parent=1 // pred_region
      %s29 = ssub.s32 256, 256
      %30 = vsyncadd [#allocation3], %s29
      %s31 = sshll.u32 [#allocation2], 4
      %s32 = int_to_ptr.vmem [resolvable:$true] %s31
      %37 = dma.hbm_to_vmem [thread:$0]  %s0, 256, %s32, [#allocation3], 64, 64, 4
    $region5: #{tpu_custom_call.1} parent=1 // pred_fallthru
      _
    // Predicated region
    $region6: #{tpu_custom_call.1} parent=1 // pred_check
      _
    $region7: #{tpu_custom_call.1} parent=1 // pred_check_branch
      %39 = sbr.rel (0) target = $region9
    $region8: #{tpu_custom_call.1} parent=1 // pred_region
      %s41 = ssub.s32 1024, 1024
      %42 = vsyncadd [#allocation6], %s41
      %s43 = sshll.u32 [#allocation5], 4
      %s44 = int_to_ptr.vmem [resolvable:$true] %s43
      %49 = dma.hbm_to_vmem [thread:$0]  %s1, 1024, %s44, [#allocation6], 64, 64, 4
    $region9: #{tpu_custom_call.1} parent=1 // pred_fallthru
      _
    // Predicated region
    $region10: #{tpu_custom_call.1} parent=1 // pred_check
      _
    $region11: #{tpu_custom_call.1} parent=1 // pred_check_branch
      %51 = sbr.rel (0) target = $region13
    $region12: #{tpu_custom_call.1} parent=1 // pred_region
      _
    $region13: #{tpu_custom_call.1} parent=1 // pred_fallthru
      _
    // Predicated region
    $region14: #{tpu_custom_call.1} parent=1 // pred_check
      _
    $region15: #{tpu_custom_call.1} parent=1 // pred_check_branch
      %53 = sbr.rel (0) target = $region17
    $region16: #{tpu_custom_call.1} parent=1 // pred_region
      %s55 = ssub.s32 1024, 1024
      %56 = vsyncadd [#allocation6], %s55
      %s57 = sshll.u32 [#allocation7], 4
      %s58 = int_to_ptr.vmem [resolvable:$true] %s57
      %63 = dma.hbm_to_vmem [thread:$0]  %s3, 1024, %s58, [#allocation6], 64, 64, 4
    $region17: #{tpu_custom_call.1} parent=1 // pred_fallthru
      _
    // Predicated region
    $region18: #{tpu_custom_call.1} parent=1 // pred_check
      _
    $region19: #{tpu_custom_call.1} parent=1 // pred_check_branch
      %65 = sbr.rel (0) target = $region21
    $region20: #{tpu_custom_call.1} parent=1 // pred_region
      _
    $region21: #{tpu_custom_call.1} parent=1 // pred_fallthru
      _
    // Predicated region
    $region22: #{tpu_custom_call.1} parent=1 // pred_check
      _
    $region23: #{tpu_custom_call.1} parent=1 // pred_check_branch
      %67 = sbr.rel (0) target = $region25
    $region24: #{tpu_custom_call.1} parent=1 // pred_region
      %s69 = ssub.s32 1024, 1024
      %70 = vsyncadd [#allocation9], %s69
      %s71 = sshll.u32 [#allocation8], 4
      %s72 = int_to_ptr.vmem [resolvable:$true] %s71
      %77 = dma.hbm_to_vmem [thread:$0]  %s5, 1024, %s72, [#allocation9], 64, 64, 4
    $region25: #{tpu_custom_call.1} parent=1 // pred_fallthru
      _
    // Predicated region
    $region26: #{tpu_custom_call.1} parent=1 // pred_check
      _
    $region27: #{tpu_custom_call.1} parent=1 // pred_check_branch
      %79 = sbr.rel (0) target = $region29
    $region28: #{tpu_custom_call.1} parent=1 // pred_region
      _
    $region29: #{tpu_custom_call.1} parent=1 // pred_fallthru
      _
    // Predicated region
    $region30: #{tpu_custom_call.1} parent=1 // pred_check
      _
    $region31: #{tpu_custom_call.1} parent=1 // pred_check_branch
      %81 = sbr.rel (0) target = $region33
    $region32: #{tpu_custom_call.1} parent=1 // pred_region
      %s83 = ssub.s32 1024, 1024
      %84 = vsyncadd [#allocation9], %s83
      %s85 = sshll.u32 [#allocation10], 4
      %s86 = int_to_ptr.vmem [resolvable:$true] %s85
      %91 = dma.hbm_to_vmem [thread:$0]  %s7, 1024, %s86, [#allocation9], 64, 64, 4
    $region33: #{tpu_custom_call.1} parent=1 // pred_fallthru
      _
    // Predicated region
    $region34: #{tpu_custom_call.1} parent=1 // pred_check
      _
    $region35: #{tpu_custom_call.1} parent=1 // pred_check_branch
      %93 = sbr.rel (0) target = $region37
    $region36: #{tpu_custom_call.1} parent=1 // pred_region
      _
    $region37: #{tpu_custom_call.1} parent=1 // pred_fallthru
      _
    // Predicated region
    $region38: #{tpu_custom_call.1} parent=1 // pred_check
      _
    $region39: #{tpu_custom_call.1} parent=1 // pred_check_branch
      %95 = sbr.rel (0) target = $region41
    $region40: #{tpu_custom_call.1} parent=1 // pred_region
      %s97 = ssub.s32 1024, 1024
      %98 = vsyncadd [#allocation12], %s97
      %s99 = sshll.u32 [#allocation11], 4
      %s100 = int_to_ptr.vmem [resolvable:$true] %s99
      %105 = dma.hbm_to_vmem [thread:$0]  %s9, 1024, %s100, [#allocation12], 64, 64, 4
    $region41: #{tpu_custom_call.1} parent=1 // pred_fallthru
      _
    // Predicated region
    $region42: #{tpu_custom_call.1} parent=1 // pred_check
      _
    $region43: #{tpu_custom_call.1} parent=1 // pred_check_branch
      %107 = sbr.rel (0) target = $region45
    $region44: #{tpu_custom_call.1} parent=1 // pred_region
      _
    $region45: #{tpu_custom_call.1} parent=1 // pred_fallthru
      _
    // Predicated region
    $region46: #{tpu_custom_call.1} parent=1 // pred_check
      _
    $region47: #{tpu_custom_call.1} parent=1 // pred_check_branch
      %109 = sbr.rel (0) target = $region49
    $region48: #{tpu_custom_call.1} parent=1 // pred_region
      %s111 = ssub.s32 1024, 1024
      %112 = vsyncadd [#allocation12], %s111
      %s113 = sshll.u32 [#allocation13], 4
      %s114 = int_to_ptr.vmem [resolvable:$true] %s113
      %119 = dma.hbm_to_vmem [thread:$0]  %s11, 1024, %s114, [#allocation12], 64, 64, 4
    $region49: #{tpu_custom_call.1} parent=1 // pred_fallthru
      _
    // Predicated region
    $region50: #{tpu_custom_call.1} parent=1 // pred_check
      _
    $region51: #{tpu_custom_call.1} parent=1 // pred_check_branch
      %121 = sbr.rel (0) target = $region53
    $region52: #{tpu_custom_call.1} parent=1 // pred_region
      _
    $region53: #{tpu_custom_call.1} parent=1 // pred_fallthru
      _
    // Predicated region
    $region54: #{tpu_custom_call.1} parent=1 // pred_check
      _
    $region55: #{tpu_custom_call.1} parent=1 // pred_check_branch
      %123 = sbr.rel (0) target = $region57
    $region56: #{tpu_custom_call.1} parent=1 // pred_region
      %124 = dma.done [#allocation3], 256
    $region57: #{tpu_custom_call.1} parent=1 // pred_fallthru
      _
    // Predicated region
    $region58: #{tpu_custom_call.1} parent=1 // pred_check
      _
    $region59: #{tpu_custom_call.1} parent=1 // pred_check_branch
      %126 = sbr.rel (0) target = $region61
    $region60: #{tpu_custom_call.1} parent=1 // pred_region
      %127 = dma.done [#allocation6], 1024
    $region61: #{tpu_custom_call.1} parent=1 // pred_fallthru
      _
    // Predicated region
    $region62: #{tpu_custom_call.1} parent=1 // pred_check
      _
    $region63: #{tpu_custom_call.1} parent=1 // pred_check_branch
      %129 = sbr.rel (0) target = $region65
    $region64: #{tpu_custom_call.1} parent=1 // pred_region
      %130 = dma.done [#allocation6], 1024
    $region65: #{tpu_custom_call.1} parent=1 // pred_fallthru
      _
    // Predicated region
    $region66: #{tpu_custom_call.1} parent=1 // pred_check
      _
    $region67: #{tpu_custom_call.1} parent=1 // pred_check_branch
      %132 = sbr.rel (0) target = $region69
    $region68: #{tpu_custom_call.1} parent=1 // pred_region
      %133 = dma.done [#allocation9], 1024
    $region69: #{tpu_custom_call.1} parent=1 // pred_fallthru
      _
    // Predicated region
    $region70: #{tpu_custom_call.1} parent=1 // pred_check
      _
    $region71: #{tpu_custom_call.1} parent=1 // pred_check_branch
      %135 = sbr.rel (0) target = $region73
    $region72: #{tpu_custom_call.1} parent=1 // pred_region
      %136 = dma.done [#allocation9], 1024
    $region73: #{tpu_custom_call.1} parent=1 // pred_fallthru
      _
    // Predicated region
    $region74: #{tpu_custom_call.1} parent=1 // pred_check
      _
    $region75: #{tpu_custom_call.1} parent=1 // pred_check_branch
      %138 = sbr.rel (0) target = $region77
    $region76: #{tpu_custom_call.1} parent=1 // pred_region
      %139 = dma.done [#allocation12], 1024
    $region77: #{tpu_custom_call.1} parent=1 // pred_fallthru
      _
    // Predicated region
    $region78: #{tpu_custom_call.1} parent=1 // pred_check
      _
    $region79: #{tpu_custom_call.1} parent=1 // pred_check_branch
      %141 = sbr.rel (0) target = $region81
    $region80: #{tpu_custom_call.1} parent=1 // pred_region
      %142 = dma.done [#allocation12], 1024
    $region81: #{tpu_custom_call.1} parent=1 // pred_fallthru
      _
    %v144 = vld [vmem:[#allocation2] sm:$0xf]
    %v145 = vld [vmem:[#allocation2 + $0x4] sm:$0xf]
    %v146 = vld [vmem:[#allocation2 + $0x8] sm:$0xf]
    %v147 = vld [vmem:[#allocation2 + $0xc] sm:$0xf]
    %v148 = vld [vmem:[#allocation5] sm:$0xf]
    %v149 = vld [vmem:[#allocation5 + $0x4] sm:$0xf]
    %v150 = vld [vmem:[#allocation5 + $0x8] sm:$0xf]
    %v151 = vld [vmem:[#allocation5 + $0xc] sm:$0xf]
    %v152 = vld [vmem:[#allocation5 + $0x10] sm:$0xf]
    %v153 = vld [vmem:[#allocation5 + $0x14] sm:$0xf]
    %v154 = vld [vmem:[#allocation5 + $0x18] sm:$0xf]
    %v155 = vld [vmem:[#allocation5 + $0x1c] sm:$0xf]
    %v156 = vld [vmem:[#allocation5 + $0x20] sm:$0xf]
    %v157 = vld [vmem:[#allocation5 + $0x24] sm:$0xf]
    %v158 = vld [vmem:[#allocation5 + $0x28] sm:$0xf]
    %v159 = vld [vmem:[#allocation5 + $0x2c] sm:$0xf]
    %v160 = vld [vmem:[#allocation5 + $0x30] sm:$0xf]
    %v161 = vld [vmem:[#allocation5 + $0x34] sm:$0xf]
    %v162 = vld [vmem:[#allocation5 + $0x38] sm:$0xf]
    %v163 = vld [vmem:[#allocation5 + $0x3c] sm:$0xf]
    %v164 = vld [vmem:[%s2] sm:$0x1]
    %v166 = vlaneseq
    %v167 = vshrl.u32 %v166, 7
    %v168 = vsub.s32 0, %v167
    %v169 = vrot.slane %v164, %v168
    %v175 = vunpack.c.l.b16 %v144
    %v176 = vunpack.c.l.b16 %v145
    %v177 = vunpack.c.l.b16 %v146
    %v178 = vunpack.c.l.b16 %v147
    %v179 = vpack.c.b16 %v176, %v175
    %v180 = vpack.c.b16 %v178, %v177
    %v199 = vunpack.c.l.b16 %v148
    %v200 = vunpack.c.l.b16 %v149
    %v201 = vunpack.c.l.b16 %v150
    %v202 = vunpack.c.l.b16 %v151
    %v203 = vunpack.c.l.b16 %v152
    %v204 = vunpack.c.l.b16 %v153
    %v205 = vunpack.c.l.b16 %v154
    %v206 = vunpack.c.l.b16 %v155
    %v207 = vunpack.c.l.b16 %v156
    %v208 = vunpack.c.l.b16 %v157
    %v209 = vunpack.c.l.b16 %v158
    %v210 = vunpack.c.l.b16 %v159
    %v211 = vunpack.c.l.b16 %v160
    %v212 = vunpack.c.l.b16 %v161
    %v213 = vunpack.c.l.b16 %v162
    %v214 = vunpack.c.l.b16 %v163
    %v215 = vpack.c.b16 %v200, %v199
    %v216 = vpack.c.b16 %v202, %v201
    %v217 = vpack.c.b16 %v204, %v203
    %v218 = vpack.c.b16 %v206, %v205
    %v219 = vpack.c.b16 %v208, %v207
    %v220 = vpack.c.b16 %v210, %v209
    %v221 = vpack.c.b16 %v212, %v211
    %v222 = vpack.c.b16 %v214, %v213
    %231 = vmatprep.subr.bf16.mxu0 0
    %232 = vmatpush1.bf16.msra.mxu0 %v215
    %233 = vmatprep.subr.bf16.mxu0 0
    %234 = vmatpush1.bf16.msra.mxu0 %v216
    %235 = vmatprep.subr.bf16.mxu0 0
    %236 = vmatpush1.bf16.msra.mxu0 %v217
    %237 = vmatprep.subr.bf16.mxu0 0
    %238 = vmatpush1.bf16.msra.mxu0 %v218
    %239 = vmatprep.subr.bf16.mxu0 0
    %240 = vmatpush1.bf16.msra.mxu0 %v219
    %241 = vmatprep.subr.bf16.mxu0 0
    %242 = vmatpush1.bf16.msra.mxu0 %v220
    %243 = vmatprep.subr.bf16.mxu0 0
    %244 = vmatpush1.bf16.msra.mxu0 %v221
    %245 = vmatprep.subr.bf16.mxu0 0
    %246 = vmatpush1.bf16.msra.mxu0 %v222
    %247 = vmatprep.subr.bf16.mxu0 0
    %248 = vmatpush1.bf16.msra.mxu0 0
    %249 = vmatprep.subr.bf16.mxu0 0
    %250 = vmatpush1.bf16.msra.mxu0 0
    %251 = vmatprep.subr.bf16.mxu0 0
    %252 = vmatpush1.bf16.msra.mxu0 0
    %253 = vmatprep.subr.bf16.mxu0 0
    %254 = vmatpush1.bf16.msra.mxu0 0
    %255 = vmatprep.subr.bf16.mxu0 0
    %256 = vmatpush1.bf16.msra.mxu0 0
    %257 = vmatprep.subr.bf16.mxu0 0
    %258 = vmatpush1.bf16.msra.mxu0 0
    %259 = vmatprep.subr.bf16.mxu0 0
    %260 = vmatpush1.bf16.msra.mxu0 0
    %261 = vmatprep.subr.bf16.mxu0 0
    %262 = vmatpush1.bf16.msra.mxu0 0
    %263 = vmatprep.mubr.bf16.mxu0 0
    %264 = vmatmul.mubr.bf16.gmra.mrb[0].mxu0 %v179
    %v265 = vpop.f32.mrb[0].mxu0
    %v266 = vadd.f32 %v169, %v265
    %v267 = vpop.f32.mrb[0].mxu0
    %v268 = vpop.f32.mrb[0].mxu0
    %v269 = vadd.f32 %v169, %v268
    %v270 = vpop.f32.mrb[0].mxu0
    %271 = vmatprep.mubr.bf16.mxu0 0
    %272 = vmatmul.mubr.bf16.gmra.mrb[0].mxu0 %v180
    %v273 = vpop.f32.mrb[0].mxu0
    %v274 = vadd.f32 %v169, %v273
    %v275 = vpop.f32.mrb[0].mxu0
    %v276 = vpop.f32.mrb[0].mxu0
    %v277 = vadd.f32 %v169, %v276
    %v278 = vpop.f32.mrb[0].mxu0
    %279 = vdwg.mxu0
    %v280 = vmax.f32 %v266, 0.0
    %v281 = vmax.f32 %v269, 0.0
    %v282 = vmax.f32 %v274, 0.0
    %v283 = vmax.f32 %v277, 0.0
    %v284 = vpack.c.bf16 %v281, %v280
    %v285 = vpack.c.bf16 %v283, %v282
    %v286 = vld [vmem:[#allocation7] sm:$0xf]
    %v287 = vld [vmem:[#allocation7 + $0x4] sm:$0xf]
    %v288 = vld [vmem:[#allocation7 + $0x8] sm:$0xf]
    %v289 = vld [vmem:[#allocation7 + $0xc] sm:$0xf]
    %v290 = vld [vmem:[#allocation7 + $0x10] sm:$0xf]
    %v291 = vld [vmem:[#allocation7 + $0x14] sm:$0xf]
    %v292 = vld [vmem:[#allocation7 + $0x18] sm:$0xf]
    %v293 = vld [vmem:[#allocation7 + $0x1c] sm:$0xf]
    %v294 = vld [vmem:[#allocation7 + $0x20] sm:$0xf]
    %v295 = vld [vmem:[#allocation7 + $0x24] sm:$0xf]
    %v296 = vld [vmem:[#allocation7 + $0x28] sm:$0xf]
    %v297 = vld [vmem:[#allocation7 + $0x2c] sm:$0xf]
    %v298 = vld [vmem:[#allocation7 + $0x30] sm:$0xf]
    %v299 = vld [vmem:[#allocation7 + $0x34] sm:$0xf]
    %v300 = vld [vmem:[#allocation7 + $0x38] sm:$0xf]
    %v301 = vld [vmem:[#allocation7 + $0x3c] sm:$0xf]
    %v302 = vld [vmem:[%s4] sm:$0x1]
    %v304 = vlaneseq
    %v305 = vshrl.u32 %v304, 7
    %v306 = vsub.s32 0, %v305
    %v307 = vrot.slane %v302, %v306
    %v325 = vunpack.c.l.b16 %v286
    %v326 = vunpack.c.l.b16 %v287
    %v327 = vunpack.c.l.b16 %v288
    %v328 = vunpack.c.l.b16 %v289
    %v329 = vunpack.c.l.b16 %v290
    %v330 = vunpack.c.l.b16 %v291
    %v331 = vunpack.c.l.b16 %v292
    %v332 = vunpack.c.l.b16 %v293
    %v333 = vunpack.c.l.b16 %v294
    %v334 = vunpack.c.l.b16 %v295
    %v335 = vunpack.c.l.b16 %v296
    %v336 = vunpack.c.l.b16 %v297
    %v337 = vunpack.c.l.b16 %v298
    %v338 = vunpack.c.l.b16 %v299
    %v339 = vunpack.c.l.b16 %v300
    %v340 = vunpack.c.l.b16 %v301
    %v341 = vpack.c.b16 %v326, %v325
    %v342 = vpack.c.b16 %v328, %v327
    %v343 = vpack.c.b16 %v330, %v329
    %v344 = vpack.c.b16 %v332, %v331
    %v345 = vpack.c.b16 %v334, %v333
    %v346 = vpack.c.b16 %v336, %v335
    %v347 = vpack.c.b16 %v338, %v337
    %v348 = vpack.c.b16 %v340, %v339
    %357 = vmatprep.subr.bf16.mxu0 0
    %358 = vmatpush1.bf16.msra.mxu0 %v341
    %359 = vmatprep.subr.bf16.mxu0 0
    %360 = vmatpush1.bf16.msra.mxu0 %v342
    %361 = vmatprep.subr.bf16.mxu0 0
    %362 = vmatpush1.bf16.msra.mxu0 %v343
    %363 = vmatprep.subr.bf16.mxu0 0
    %364 = vmatpush1.bf16.msra.mxu0 %v344
    %365 = vmatprep.subr.bf16.mxu0 0
    %366 = vmatpush1.bf16.msra.mxu0 %v345
    %367 = vmatprep.subr.bf16.mxu0 0
    %368 = vmatpush1.bf16.msra.mxu0 %v346
    %369 = vmatprep.subr.bf16.mxu0 0
    %370 = vmatpush1.bf16.msra.mxu0 %v347
    %371 = vmatprep.subr.bf16.mxu0 0
    %372 = vmatpush1.bf16.msra.mxu0 %v348
    %373 = vmatprep.subr.bf16.mxu0 0
    %374 = vmatpush1.bf16.msra.mxu0 0
    %375 = vmatprep.subr.bf16.mxu0 0
    %376 = vmatpush1.bf16.msra.mxu0 0
    %377 = vmatprep.subr.bf16.mxu0 0
    %378 = vmatpush1.bf16.msra.mxu0 0
    %379 = vmatprep.subr.bf16.mxu0 0
    %380 = vmatpush1.bf16.msra.mxu0 0
    %381 = vmatprep.subr.bf16.mxu0 0
    %382 = vmatpush1.bf16.msra.mxu0 0
    %383 = vmatprep.subr.bf16.mxu0 0
    %384 = vmatpush1.bf16.msra.mxu0 0
    %385 = vmatprep.subr.bf16.mxu0 0
    %386 = vmatpush1.bf16.msra.mxu0 0
    %387 = vmatprep.subr.bf16.mxu0 0
    %388 = vmatpush1.bf16.msra.mxu0 0
    %389 = vmatprep.mubr.bf16.mxu0 0
    %390 = vmatmul.mubr.bf16.gmra.mrb[0].mxu0 %v284
    %v391 = vpop.f32.mrb[0].mxu0
    %v392 = vadd.f32 %v307, %v391
    %v393 = vpop.f32.mrb[0].mxu0
    %v394 = vpop.f32.mrb[0].mxu0
    %v395 = vadd.f32 %v307, %v394
    %v396 = vpop.f32.mrb[0].mxu0
    %397 = vmatprep.mubr.bf16.mxu0 0
    %398 = vmatmul.mubr.bf16.gmra.mrb[0].mxu0 %v285
    %v399 = vpop.f32.mrb[0].mxu0
    %v400 = vadd.f32 %v307, %v399
    %v401 = vpop.f32.mrb[0].mxu0
    %v402 = vpop.f32.mrb[0].mxu0
    %v403 = vadd.f32 %v307, %v402
    %v404 = vpop.f32.mrb[0].mxu0
    %405 = vdwg.mxu0
    %v406 = vmax.f32 %v392, 0.0
    %v407 = vmax.f32 %v395, 0.0
    %v408 = vmax.f32 %v400, 0.0
    %v409 = vmax.f32 %v403, 0.0
    %v410 = vpack.c.bf16 %v407, %v406
    %v411 = vpack.c.bf16 %v409, %v408
    %v412 = vld [vmem:[#allocation8] sm:$0xf]
    %v413 = vld [vmem:[#allocation8 + $0x4] sm:$0xf]
    %v414 = vld [vmem:[#allocation8 + $0x8] sm:$0xf]
    %v415 = vld [vmem:[#allocation8 + $0xc] sm:$0xf]
    %v416 = vld [vmem:[#allocation8 + $0x10] sm:$0xf]
    %v417 = vld [vmem:[#allocation8 + $0x14] sm:$0xf]
    %v418 = vld [vmem:[#allocation8 + $0x18] sm:$0xf]
    %v419 = vld [vmem:[#allocation8 + $0x1c] sm:$0xf]
    %v420 = vld [vmem:[#allocation8 + $0x20] sm:$0xf]
    %v421 = vld [vmem:[#allocation8 + $0x24] sm:$0xf]
    %v422 = vld [vmem:[#allocation8 + $0x28] sm:$0xf]
    %v423 = vld [vmem:[#allocation8 + $0x2c] sm:$0xf]
    %v424 = vld [vmem:[#allocation8 + $0x30] sm:$0xf]
    %v425 = vld [vmem:[#allocation8 + $0x34] sm:$0xf]
    %v426 = vld [vmem:[#allocation8 + $0x38] sm:$0xf]
    %v427 = vld [vmem:[#allocation8 + $0x3c] sm:$0xf]
    %v428 = vld [vmem:[%s6] sm:$0x1]
    %v430 = vlaneseq
    %v431 = vshrl.u32 %v430, 7
    %v432 = vsub.s32 0, %v431
    %v433 = vrot.slane %v428, %v432
    %v451 = vunpack.c.l.b16 %v412
    %v452 = vunpack.c.l.b16 %v413
    %v453 = vunpack.c.l.b16 %v414
    %v454 = vunpack.c.l.b16 %v415
    %v455 = vunpack.c.l.b16 %v416
    %v456 = vunpack.c.l.b16 %v417
    %v457 = vunpack.c.l.b16 %v418
    %v458 = vunpack.c.l.b16 %v419
    %v459 = vunpack.c.l.b16 %v420
    %v460 = vunpack.c.l.b16 %v421
    %v461 = vunpack.c.l.b16 %v422
    %v462 = vunpack.c.l.b16 %v423
    %v463 = vunpack.c.l.b16 %v424
    %v464 = vunpack.c.l.b16 %v425
    %v465 = vunpack.c.l.b16 %v426
    %v466 = vunpack.c.l.b16 %v427
    %v467 = vpack.c.b16 %v452, %v451
    %v468 = vpack.c.b16 %v454, %v453
    %v469 = vpack.c.b16 %v456, %v455
    %v470 = vpack.c.b16 %v458, %v457
    %v471 = vpack.c.b16 %v460, %v459
    %v472 = vpack.c.b16 %v462, %v461
    %v473 = vpack.c.b16 %v464, %v463
    %v474 = vpack.c.b16 %v466, %v465
    %483 = vmatprep.subr.bf16.mxu0 0
    %484 = vmatpush1.bf16.msra.mxu0 %v467
    %485 = vmatprep.subr.bf16.mxu0 0
    %486 = vmatpush1.bf16.msra.mxu0 %v468
    %487 = vmatprep.subr.bf16.mxu0 0
    %488 = vmatpush1.bf16.msra.mxu0 %v469
    %489 = vmatprep.subr.bf16.mxu0 0
    %490 = vmatpush1.bf16.msra.mxu0 %v470
    %491 = vmatprep.subr.bf16.mxu0 0
    %492 = vmatpush1.bf16.msra.mxu0 %v471
    %493 = vmatprep.subr.bf16.mxu0 0
    %494 = vmatpush1.bf16.msra.mxu0 %v472
    %495 = vmatprep.subr.bf16.mxu0 0
    %496 = vmatpush1.bf16.msra.mxu0 %v473
    %497 = vmatprep.subr.bf16.mxu0 0
    %498 = vmatpush1.bf16.msra.mxu0 %v474
    %499 = vmatprep.subr.bf16.mxu0 0
    %500 = vmatpush1.bf16.msra.mxu0 0
    %501 = vmatprep.subr.bf16.mxu0 0
    %502 = vmatpush1.bf16.msra.mxu0 0
    %503 = vmatprep.subr.bf16.mxu0 0
    %504 = vmatpush1.bf16.msra.mxu0 0
    %505 = vmatprep.subr.bf16.mxu0 0
    %506 = vmatpush1.bf16.msra.mxu0 0
    %507 = vmatprep.subr.bf16.mxu0 0
    %508 = vmatpush1.bf16.msra.mxu0 0
    %509 = vmatprep.subr.bf16.mxu0 0
    %510 = vmatpush1.bf16.msra.mxu0 0
    %511 = vmatprep.subr.bf16.mxu0 0
    %512 = vmatpush1.bf16.msra.mxu0 0
    %513 = vmatprep.subr.bf16.mxu0 0
    %514 = vmatpush1.bf16.msra.mxu0 0
    %515 = vmatprep.mubr.bf16.mxu0 0
    %516 = vmatmul.mubr.bf16.gmra.mrb[0].mxu0 %v410
    %v517 = vpop.f32.mrb[0].mxu0
    %v518 = vadd.f32 %v433, %v517
    %v519 = vpop.f32.mrb[0].mxu0
    %v520 = vpop.f32.mrb[0].mxu0
    %v521 = vadd.f32 %v433, %v520
    %v522 = vpop.f32.mrb[0].mxu0
    %523 = vmatprep.mubr.bf16.mxu0 0
    %524 = vmatmul.mubr.bf16.gmra.mrb[0].mxu0 %v411
    %v525 = vpop.f32.mrb[0].mxu0
    %v526 = vadd.f32 %v433, %v525
    %v527 = vpop.f32.mrb[0].mxu0
    %v528 = vpop.f32.mrb[0].mxu0
    %v529 = vadd.f32 %v433, %v528
    %v530 = vpop.f32.mrb[0].mxu0
    %531 = vdwg.mxu0
    %532 = vst [vmem:[#allocation14] sm:$0xff] %v518
    %533 = vst [vmem:[#allocation14 + $0x8] sm:$0xff] %v521
    %534 = vst [vmem:[#allocation14 + $0x10] sm:$0xff] %v526
    %535 = vst [vmem:[#allocation14 + $0x18] sm:$0xff] %v529
    %v536 = vld [vmem:[#allocation10] sm:$0xf]
    %v537 = vld [vmem:[#allocation10 + $0x4] sm:$0xf]
    %v538 = vld [vmem:[#allocation10 + $0x8] sm:$0xf]
    %v539 = vld [vmem:[#allocation10 + $0xc] sm:$0xf]
    %v540 = vld [vmem:[#allocation10 + $0x10] sm:$0xf]
    %v541 = vld [vmem:[#allocation10 + $0x14] sm:$0xf]
    %v542 = vld [vmem:[#allocation10 + $0x18] sm:$0xf]
    %v543 = vld [vmem:[#allocation10 + $0x1c] sm:$0xf]
    %v544 = vld [vmem:[#allocation10 + $0x20] sm:$0xf]
    %v545 = vld [vmem:[#allocation10 + $0x24] sm:$0xf]
    %v546 = vld [vmem:[#allocation10 + $0x28] sm:$0xf]
    %v547 = vld [vmem:[#allocation10 + $0x2c] sm:$0xf]
    %v548 = vld [vmem:[#allocation10 + $0x30] sm:$0xf]
    %v549 = vld [vmem:[#allocation10 + $0x34] sm:$0xf]
    %v550 = vld [vmem:[#allocation10 + $0x38] sm:$0xf]
    %v551 = vld [vmem:[#allocation10 + $0x3c] sm:$0xf]
    %v552 = vld [vmem:[%s8] sm:$0x1]
    %v553 = vpack.c.bf16 %v521, %v518
    %v554 = vpack.c.bf16 %v529, %v526
    %v556 = vlaneseq
    %v557 = vshrl.u32 %v556, 7
    %v558 = vsub.s32 0, %v557
    %v559 = vrot.slane %v552, %v558
    %v577 = vunpack.c.l.b16 %v536
    %v578 = vunpack.c.l.b16 %v537
    %v579 = vunpack.c.l.b16 %v538
    %v580 = vunpack.c.l.b16 %v539
    %v581 = vunpack.c.l.b16 %v540
    %v582 = vunpack.c.l.b16 %v541
    %v583 = vunpack.c.l.b16 %v542
    %v584 = vunpack.c.l.b16 %v543
    %v585 = vunpack.c.l.b16 %v544
    %v586 = vunpack.c.l.b16 %v545
    %v587 = vunpack.c.l.b16 %v546
    %v588 = vunpack.c.l.b16 %v547
    %v589 = vunpack.c.l.b16 %v548
    %v590 = vunpack.c.l.b16 %v549
    %v591 = vunpack.c.l.b16 %v550
    %v592 = vunpack.c.l.b16 %v551
    %v593 = vpack.c.b16 %v578, %v577
    %v594 = vpack.c.b16 %v580, %v579
    %v595 = vpack.c.b16 %v582, %v581
    %v596 = vpack.c.b16 %v584, %v583
    %v597 = vpack.c.b16 %v586, %v585
    %v598 = vpack.c.b16 %v588, %v587
    %v599 = vpack.c.b16 %v590, %v589
    %v600 = vpack.c.b16 %v592, %v591
    %609 = vmatprep.subr.bf16.mxu0 0
    %610 = vmatpush1.bf16.msra.mxu0 %v593
    %611 = vmatprep.subr.bf16.mxu0 0
    %612 = vmatpush1.bf16.msra.mxu0 %v594
    %613 = vmatprep.subr.bf16.mxu0 0
    %614 = vmatpush1.bf16.msra.mxu0 %v595
    %615 = vmatprep.subr.bf16.mxu0 0
    %616 = vmatpush1.bf16.msra.mxu0 %v596
    %617 = vmatprep.subr.bf16.mxu0 0
    %618 = vmatpush1.bf16.msra.mxu0 %v597
    %619 = vmatprep.subr.bf16.mxu0 0
    %620 = vmatpush1.bf16.msra.mxu0 %v598
    %621 = vmatprep.subr.bf16.mxu0 0
    %622 = vmatpush1.bf16.msra.mxu0 %v599
    %623 = vmatprep.subr.bf16.mxu0 0
    %624 = vmatpush1.bf16.msra.mxu0 %v600
    %625 = vmatprep.subr.bf16.mxu0 0
    %626 = vmatpush1.bf16.msra.mxu0 0
    %627 = vmatprep.subr.bf16.mxu0 0
    %628 = vmatpush1.bf16.msra.mxu0 0
    %629 = vmatprep.subr.bf16.mxu0 0
    %630 = vmatpush1.bf16.msra.mxu0 0
    %631 = vmatprep.subr.bf16.mxu0 0
    %632 = vmatpush1.bf16.msra.mxu0 0
    %633 = vmatprep.subr.bf16.mxu0 0
    %634 = vmatpush1.bf16.msra.mxu0 0
    %635 = vmatprep.subr.bf16.mxu0 0
    %636 = vmatpush1.bf16.msra.mxu0 0
    %637 = vmatprep.subr.bf16.mxu0 0
    %638 = vmatpush1.bf16.msra.mxu0 0
    %639 = vmatprep.subr.bf16.mxu0 0
    %640 = vmatpush1.bf16.msra.mxu0 0
    %641 = vmatprep.mubr.bf16.mxu0 0
    %642 = vmatmul.mubr.bf16.gmra.mrb[0].mxu0 %v553
    %v643 = vpop.f32.mrb[0].mxu0
    %v644 = vadd.f32 %v559, %v643
    %v645 = vpop.f32.mrb[0].mxu0
    %v646 = vpop.f32.mrb[0].mxu0
    %v647 = vadd.f32 %v559, %v646
    %v648 = vpop.f32.mrb[0].mxu0
    %649 = vmatprep.mubr.bf16.mxu0 0
    %650 = vmatmul.mubr.bf16.gmra.mrb[0].mxu0 %v554
    %v651 = vpop.f32.mrb[0].mxu0
    %v652 = vadd.f32 %v559, %v651
    %v653 = vpop.f32.mrb[0].mxu0
    %v654 = vpop.f32.mrb[0].mxu0
    %v655 = vadd.f32 %v559, %v654
    %v656 = vpop.f32.mrb[0].mxu0
    %657 = vdwg.mxu0
    %v658 = vmax.f32 %v644, 0.0
    %v659 = vmax.f32 %v647, 0.0
    %v660 = vmax.f32 %v652, 0.0
    %v661 = vmax.f32 %v655, 0.0
    %v662 = vpack.c.bf16 %v659, %v658
    %v663 = vpack.c.bf16 %v661, %v660
    %v664 = vld [vmem:[#allocation11] sm:$0xf]
    %v665 = vld [vmem:[#allocation11 + $0x4] sm:$0xf]
    %v666 = vld [vmem:[#allocation11 + $0x8] sm:$0xf]
    %v667 = vld [vmem:[#allocation11 + $0xc] sm:$0xf]
    %v668 = vld [vmem:[#allocation11 + $0x10] sm:$0xf]
    %v669 = vld [vmem:[#allocation11 + $0x14] sm:$0xf]
    %v670 = vld [vmem:[#allocation11 + $0x18] sm:$0xf]
    %v671 = vld [vmem:[#allocation11 + $0x1c] sm:$0xf]
    %v672 = vld [vmem:[#allocation11 + $0x20] sm:$0xf]
    %v673 = vld [vmem:[#allocation11 + $0x24] sm:$0xf]
    %v674 = vld [vmem:[#allocation11 + $0x28] sm:$0xf]
    %v675 = vld [vmem:[#allocation11 + $0x2c] sm:$0xf]
    %v676 = vld [vmem:[#allocation11 + $0x30] sm:$0xf]
    %v677 = vld [vmem:[#allocation11 + $0x34] sm:$0xf]
    %v678 = vld [vmem:[#allocation11 + $0x38] sm:$0xf]
    %v679 = vld [vmem:[#allocation11 + $0x3c] sm:$0xf]
    %v680 = vld [vmem:[%s10] sm:$0x1]
    %v682 = vlaneseq
    %v683 = vshrl.u32 %v682, 7
    %v684 = vsub.s32 0, %v683
    %v685 = vrot.slane %v680, %v684
    %v703 = vunpack.c.l.b16 %v664
    %v704 = vunpack.c.l.b16 %v665
    %v705 = vunpack.c.l.b16 %v666
    %v706 = vunpack.c.l.b16 %v667
    %v707 = vunpack.c.l.b16 %v668
    %v708 = vunpack.c.l.b16 %v669
    %v709 = vunpack.c.l.b16 %v670
    %v710 = vunpack.c.l.b16 %v671
    %v711 = vunpack.c.l.b16 %v672
    %v712 = vunpack.c.l.b16 %v673
    %v713 = vunpack.c.l.b16 %v674
    %v714 = vunpack.c.l.b16 %v675
    %v715 = vunpack.c.l.b16 %v676
    %v716 = vunpack.c.l.b16 %v677
    %v717 = vunpack.c.l.b16 %v678
    %v718 = vunpack.c.l.b16 %v679
    %v719 = vpack.c.b16 %v704, %v703
    %v720 = vpack.c.b16 %v706, %v705
    %v721 = vpack.c.b16 %v708, %v707
    %v722 = vpack.c.b16 %v710, %v709
    %v723 = vpack.c.b16 %v712, %v711
    %v724 = vpack.c.b16 %v714, %v713
    %v725 = vpack.c.b16 %v716, %v715
    %v726 = vpack.c.b16 %v718, %v717
    %735 = vmatprep.subr.bf16.mxu0 0
    %736 = vmatpush1.bf16.msra.mxu0 %v719
    %737 = vmatprep.subr.bf16.mxu0 0
    %738 = vmatpush1.bf16.msra.mxu0 %v720
    %739 = vmatprep.subr.bf16.mxu0 0
    %740 = vmatpush1.bf16.msra.mxu0 %v721
    %741 = vmatprep.subr.bf16.mxu0 0
    %742 = vmatpush1.bf16.msra.mxu0 %v722
    %743 = vmatprep.subr.bf16.mxu0 0
    %744 = vmatpush1.bf16.msra.mxu0 %v723
    %745 = vmatprep.subr.bf16.mxu0 0
    %746 = vmatpush1.bf16.msra.mxu0 %v724
    %747 = vmatprep.subr.bf16.mxu0 0
    %748 = vmatpush1.bf16.msra.mxu0 %v725
    %749 = vmatprep.subr.bf16.mxu0 0
    %750 = vmatpush1.bf16.msra.mxu0 %v726
    %751 = vmatprep.subr.bf16.mxu0 0
    %752 = vmatpush1.bf16.msra.mxu0 0
    %753 = vmatprep.subr.bf16.mxu0 0
    %754 = vmatpush1.bf16.msra.mxu0 0
    %755 = vmatprep.subr.bf16.mxu0 0
    %756 = vmatpush1.bf16.msra.mxu0 0
    %757 = vmatprep.subr.bf16.mxu0 0
    %758 = vmatpush1.bf16.msra.mxu0 0
    %759 = vmatprep.subr.bf16.mxu0 0
    %760 = vmatpush1.bf16.msra.mxu0 0
    %761 = vmatprep.subr.bf16.mxu0 0
    %762 = vmatpush1.bf16.msra.mxu0 0
    %763 = vmatprep.subr.bf16.mxu0 0
    %764 = vmatpush1.bf16.msra.mxu0 0
    %765 = vmatprep.subr.bf16.mxu0 0
    %766 = vmatpush1.bf16.msra.mxu0 0
    %767 = vmatprep.mubr.bf16.mxu0 0
    %768 = vmatmul.mubr.bf16.gmra.mrb[0].mxu0 %v662
    %v769 = vpop.f32.mrb[0].mxu0
    %v770 = vadd.f32 %v685, %v769
    %v771 = vpop.f32.mrb[0].mxu0
    %v772 = vpop.f32.mrb[0].mxu0
    %v773 = vadd.f32 %v685, %v772
    %v774 = vpop.f32.mrb[0].mxu0
    %775 = vmatprep.mubr.bf16.mxu0 0
    %776 = vmatmul.mubr.bf16.gmra.mrb[0].mxu0 %v663
    %v777 = vpop.f32.mrb[0].mxu0
    %v778 = vadd.f32 %v685, %v777
    %v779 = vpop.f32.mrb[0].mxu0
    %v780 = vpop.f32.mrb[0].mxu0
    %v781 = vadd.f32 %v685, %v780
    %v782 = vpop.f32.mrb[0].mxu0
    %783 = vdwg.mxu0
    %v784 = vmax.f32 %v770, 0.0
    %v785 = vmax.f32 %v773, 0.0
    %v786 = vmax.f32 %v778, 0.0
    %v787 = vmax.f32 %v781, 0.0
    %v788 = vpack.c.bf16 %v785, %v784
    %v789 = vpack.c.bf16 %v787, %v786
    %v790 = vld [vmem:[#allocation13] sm:$0xf]
    %v791 = vld [vmem:[#allocation13 + $0x4] sm:$0xf]
    %v792 = vld [vmem:[#allocation13 + $0x8] sm:$0xf]
    %v793 = vld [vmem:[#allocation13 + $0xc] sm:$0xf]
    %v794 = vld [vmem:[#allocation13 + $0x10] sm:$0xf]
    %v795 = vld [vmem:[#allocation13 + $0x14] sm:$0xf]
    %v796 = vld [vmem:[#allocation13 + $0x18] sm:$0xf]
    %v797 = vld [vmem:[#allocation13 + $0x1c] sm:$0xf]
    %v798 = vld [vmem:[#allocation13 + $0x20] sm:$0xf]
    %v799 = vld [vmem:[#allocation13 + $0x24] sm:$0xf]
    %v800 = vld [vmem:[#allocation13 + $0x28] sm:$0xf]
    %v801 = vld [vmem:[#allocation13 + $0x2c] sm:$0xf]
    %v802 = vld [vmem:[#allocation13 + $0x30] sm:$0xf]
    %v803 = vld [vmem:[#allocation13 + $0x34] sm:$0xf]
    %v804 = vld [vmem:[#allocation13 + $0x38] sm:$0xf]
    %v805 = vld [vmem:[#allocation13 + $0x3c] sm:$0xf]
    %v806 = vld [vmem:[%s12] sm:$0x1]
    %v808 = vlaneseq
    %v809 = vshrl.u32 %v808, 7
    %v810 = vsub.s32 0, %v809
    %v811 = vrot.slane %v806, %v810
    %v829 = vunpack.c.l.b16 %v790
    %v830 = vunpack.c.l.b16 %v791
    %v831 = vunpack.c.l.b16 %v792
    %v832 = vunpack.c.l.b16 %v793
    %v833 = vunpack.c.l.b16 %v794
    %v834 = vunpack.c.l.b16 %v795
    %v835 = vunpack.c.l.b16 %v796
    %v836 = vunpack.c.l.b16 %v797
    %v837 = vunpack.c.l.b16 %v798
    %v838 = vunpack.c.l.b16 %v799
    %v839 = vunpack.c.l.b16 %v800
    %v840 = vunpack.c.l.b16 %v801
    %v841 = vunpack.c.l.b16 %v802
    %v842 = vunpack.c.l.b16 %v803
    %v843 = vunpack.c.l.b16 %v804
    %v844 = vunpack.c.l.b16 %v805
    %v845 = vpack.c.b16 %v830, %v829
    %v846 = vpack.c.b16 %v832, %v831
    %v847 = vpack.c.b16 %v834, %v833
    %v848 = vpack.c.b16 %v836, %v835
    %v849 = vpack.c.b16 %v838, %v837
    %v850 = vpack.c.b16 %v840, %v839
    %v851 = vpack.c.b16 %v842, %v841
    %v852 = vpack.c.b16 %v844, %v843
    %861 = vmatprep.subr.bf16.mxu0 0
    %862 = vmatpush1.bf16.msra.mxu0 %v845
    %863 = vmatprep.subr.bf16.mxu0 0
    %864 = vmatpush1.bf16.msra.mxu0 %v846
    %865 = vmatprep.subr.bf16.mxu0 0
    %866 = vmatpush1.bf16.msra.mxu0 %v847
    %867 = vmatprep.subr.bf16.mxu0 0
    %868 = vmatpush1.bf16.msra.mxu0 %v848
    %869 = vmatprep.subr.bf16.mxu0 0
    %870 = vmatpush1.bf16.msra.mxu0 %v849
    %871 = vmatprep.subr.bf16.mxu0 0
    %872 = vmatpush1.bf16.msra.mxu0 %v850
    %873 = vmatprep.subr.bf16.mxu0 0
    %874 = vmatpush1.bf16.msra.mxu0 %v851
    %875 = vmatprep.subr.bf16.mxu0 0
    %876 = vmatpush1.bf16.msra.mxu0 %v852
    %877 = vmatprep.subr.bf16.mxu0 0
    %878 = vmatpush1.bf16.msra.mxu0 0
    %879 = vmatprep.subr.bf16.mxu0 0
    %880 = vmatpush1.bf16.msra.mxu0 0
    %881 = vmatprep.subr.bf16.mxu0 0
    %882 = vmatpush1.bf16.msra.mxu0 0
    %883 = vmatprep.subr.bf16.mxu0 0
    %884 = vmatpush1.bf16.msra.mxu0 0
    %885 = vmatprep.subr.bf16.mxu0 0
    %886 = vmatpush1.bf16.msra.mxu0 0
    %887 = vmatprep.subr.bf16.mxu0 0
    %888 = vmatpush1.bf16.msra.mxu0 0
    %889 = vmatprep.subr.bf16.mxu0 0
    %890 = vmatpush1.bf16.msra.mxu0 0
    %891 = vmatprep.subr.bf16.mxu0 0
    %892 = vmatpush1.bf16.msra.mxu0 0
    %893 = vmatprep.mubr.bf16.mxu0 0
    %894 = vmatmul.mubr.bf16.gmra.mrb[0].mxu0 %v788
    %v895 = vpop.f32.mrb[0].mxu0
    %v896 = vadd.f32 %v811, %v895
    %v897 = vpop.f32.mrb[0].mxu0
    %v898 = vpop.f32.mrb[0].mxu0
    %v899 = vadd.f32 %v811, %v898
    %v900 = vpop.f32.mrb[0].mxu0
    %901 = vmatprep.mubr.bf16.mxu0 0
    %902 = vmatmul.mubr.bf16.gmra.mrb[0].mxu0 %v789
    %v903 = vpop.f32.mrb[0].mxu0
    %v904 = vadd.f32 %v811, %v903
    %v905 = vpop.f32.mrb[0].mxu0
    %v906 = vpop.f32.mrb[0].mxu0
    %v907 = vadd.f32 %v811, %v906
    %v908 = vpop.f32.mrb[0].mxu0
    %909 = vdwg.mxu0
    %910 = vst [vmem:[#allocation15] sm:$0xff] %v896
    %911 = vst [vmem:[#allocation15 + $0x8] sm:$0xff] %v899
    %912 = vst [vmem:[#allocation15 + $0x10] sm:$0xff] %v904
    %913 = vst [vmem:[#allocation15 + $0x18] sm:$0xff] %v907
    // Predicated region
    $region82: #{tpu_custom_call.1} parent=1 // pred_check
      _
    $region83: #{tpu_custom_call.1} parent=1 // pred_check_branch
      %915 = sbr.rel (0) target = $region85
    $region84: #{tpu_custom_call.1} parent=1 // pred_region
      %s917 = ssub.s32 512, 512
      %918 = vsyncadd [#allocation4], %s917
      %s919 = sshll.u32 [#allocation14], 4
      %s920 = int_to_ptr.vmem [resolvable:$true] %s919
      %925 = dma.vmem_to_hbm [thread:$0]  %s920, 512, %s13, [#allocation4], 128, 128, 8
    $region85: #{tpu_custom_call.1} parent=1 // pred_fallthru
      _
    // Predicated region
    $region86: #{tpu_custom_call.1} parent=1 // pred_check
      _
    $region87: #{tpu_custom_call.1} parent=1 // pred_check_branch
      %927 = sbr.rel (0) target = $region89
    $region88: #{tpu_custom_call.1} parent=1 // pred_region
      %s929 = ssub.s32 512, 512
      %930 = vsyncadd [#allocation16], %s929
      %s931 = sshll.u32 [#allocation15], 4
      %s932 = int_to_ptr.vmem [resolvable:$true] %s931
      %937 = dma.vmem_to_hbm [thread:$0]  %s932, 512, %s14, [#allocation16], 128, 128, 8
    $region89: #{tpu_custom_call.1} parent=1 // pred_fallthru
      _
    // Predicated region
    $region90: #{tpu_custom_call.1} parent=1 // pred_check
      _
    $region91: #{tpu_custom_call.1} parent=1 // pred_check_branch
      %939 = sbr.rel (0) target = $region93
    $region92: #{tpu_custom_call.1} parent=1 // pred_region
      %940 = dma.done [#allocation4], 512
    $region93: #{tpu_custom_call.1} parent=1 // pred_fallthru
      _
    // Predicated region
    $region94: #{tpu_custom_call.1} parent=1 // pred_check
      _
    $region95: #{tpu_custom_call.1} parent=1 // pred_check_branch
      %942 = sbr.rel (0) target = $region97
    $region96: #{tpu_custom_call.1} parent=1 // pred_region
      %943 = dma.done [#allocation16], 512
    $region97: #{tpu_custom_call.1} parent=1 // pred_fallthru
      _
    %944 = vsyncpa [#allocation3], 1
    %945 = vsyncpa [#allocation6], 1
    %946 = vsyncpa [#allocation9], 1
    %947 = vsyncpa [#allocation12], 1
    %948 = vsyncpa [#allocation4], 1
    %949 = vsyncpa [#allocation16], 1

// kernel: tpu_custom_call.1
$region0: #{tpu_custom_call.1}
  #allocation0 [shape = 'u32[]', space=smem, size = 0x4, offset = 0x4, fixed_abs, tag = 'smem constant byte address 0x4 - core index']
  #allocation1 [shape = 'u32[144,128]{1,0:T(1,128)}', space=vmem, size = 0x12000, scoped, tag = 'internal scratch']
  %s0 = inlined_call_operand.hbm [shape: bf16[32,128], index: 0, kind: input, shape index: {}]
  %s1 = inlined_call_operand.hbm [shape: bf16[128,128], index: 1, kind: input, shape index: {}]
  %s2 = inlined_call_operand.vmem [shape: f32[1,128], index: 2, kind: input, shape index: {}]
  %s3 = inlined_call_operand.hbm [shape: bf16[128,128], index: 3, kind: input, shape index: {}]
  %s4 = inlined_call_operand.vmem [shape: f32[1,128], index: 4, kind: input, shape index: {}]
  %s5 = inlined_call_operand.hbm [shape: bf16[128,128], index: 5, kind: input, shape index: {}]
  %s6 = inlined_call_operand.vmem [shape: f32[1,128], index: 6, kind: input, shape index: {}]
  %s7 = inlined_call_operand.hbm [shape: bf16[128,128], index: 7, kind: input, shape index: {}]
  %s8 = inlined_call_operand.vmem [shape: f32[1,128], index: 8, kind: input, shape index: {}]
  %s9 = inlined_call_operand.hbm [shape: bf16[128,128], index: 9, kind: input, shape index: {}]
  %s10 = inlined_call_operand.vmem [shape: f32[1,128], index: 10, kind: input, shape index: {}]
  %s11 = inlined_call_operand.hbm [shape: bf16[128,128], index: 11, kind: input, shape index: {}]
  %s12 = inlined_call_operand.vmem [shape: f32[1,128], index: 12, kind: input, shape index: {}]
  %s13 = inlined_call_operand.hbm [shape: f32[32,128], index: 13, kind: output, shape index: {0}]
  %s14 = inlined_call_operand.hbm [shape: f32[32,128], index: 14, kind: output, shape index: {1}]
  %15 = xla_tuple %s13, %s14
  %s16 = sld [smem:[#allocation0]]
  $region98: #{tpu_custom_call.1} parent=0
    _
  %s18 = ssub.s32 1, %s16
  %s19 = scalar_select 0, %s18, %s16
  $region1: #{tpu_custom_call.1} parent=0
    #allocation2 [shape = 'u8[8192]{0}', space=vmem, size = 0x2000, scoped, tag = 'input window, operand 0, single buffered']
    #allocation3 [shape = 's32[1]{0}', space=sflag, size = 0x4, scoped, tag = 'scoped memory for tpu_custom_call.1']
    #allocation4 [shape = 's32[1]{0}', space=sflag, size = 0x4, scoped, tag = 'scoped memory for tpu_custom_call.1']
    #allocation5 [shape = 'u8[32768]{0}', space=vmem, size = 0x8000, scoped, tag = 'input window, operand 1, single buffered']
    #allocation6 [shape = 's32[1]{0}', space=sflag, size = 0x4, scoped, tag = 'scoped memory for tpu_custom_call.1']
    #allocation7 [shape = 'u8[32768]{0}', space=vmem, size = 0x8000, scoped, tag = 'input window, operand 3, single buffered']
    #allocation8 [shape = 'u8[32768]{0}', space=vmem, size = 0x8000, scoped, tag = 'input window, operand 5, single buffered']
    #allocation9 [shape = 's32[1]{0}', space=sflag, size = 0x4, scoped, tag = 'scoped memory for tpu_custom_call.1']
    #allocation10 [shape = 'u8[32768]{0}', space=vmem, size = 0x8000, scoped, tag = 'input window, operand 7, single buffered']
    #allocation11 [shape = 'u8[32768]{0}', space=vmem, size = 0x8000, scoped, tag = 'input window, operand 9, single buffered']
    #allocation12 [shape = 's32[1]{0}', space=sflag, size = 0x4, scoped, tag = 'scoped memory for tpu_custom_call.1']
    #allocation13 [shape = 'u8[32768]{0}', space=vmem, size = 0x8000, scoped, tag = 'input window, operand 11, single buffered']
    #allocation14 [shape = 'u8[16384]{0}', space=vmem, size = 0x4000, scoped, tag = 'output window, operand 0, single buffered']
    #allocation15 [shape = 'u8[16384]{0}', space=vmem, size = 0x4000, scoped, tag = 'output window, operand 1, single buffered']
    #allocation16 [shape = 's32[1]{0}', space=sflag, size = 0x4, scoped, tag = 'scoped memory for tpu_custom_call.1']
    %20 = vsyncpa [#allocation3], 0
    %21 = vsyncpa [#allocation6], 0
    %22 = vsyncpa [#allocation9], 0
    %23 = vsyncpa [#allocation12], 0
    %24 = vsyncpa [#allocation4], 0
    %25 = vsyncpa [#allocation16], 0
    // Predicated region
    $region2: #{tpu_custom_call.1} parent=1 // pred_check
      _
    $region3: #{tpu_custom_call.1} parent=1 // pred_check_branch
      %27 = sbr.rel (0) target = $region5
    $region4: #{tpu_custom_call.1} parent=1 // pred_region
      %s29 = ssub.s32 256, 256
      %30 = vsyncadd [#allocation3], %s29
      %s31 = sshll.u32 [#allocation2], 4
      %s32 = int_to_ptr.vmem [resolvable:$true] %s31
      %37 = dma.hbm_to_vmem [thread:$0]  %s0, 256, %s32, [#allocation3], 64, 64, 4
    $region5: #{tpu_custom_call.1} parent=1 // pred_fallthru
      _
    // Predicated region
    $region6: #{tpu_custom_call.1} parent=1 // pred_check
      _
    $region7: #{tpu_custom_call.1} parent=1 // pred_check_branch
      %39 = sbr.rel (0) target = $region9
    $region8: #{tpu_custom_call.1} parent=1 // pred_region
      %s41 = ssub.s32 1024, 1024
      %42 = vsyncadd [#allocation6], %s41
      %s43 = sshll.u32 [#allocation5], 4
      %s44 = int_to_ptr.vmem [resolvable:$true] %s43
      %49 = dma.hbm_to_vmem [thread:$0]  %s1, 1024, %s44, [#allocation6], 64, 64, 4
    $region9: #{tpu_custom_call.1} parent=1 // pred_fallthru
      _
    // Predicated region
    $region10: #{tpu_custom_call.1} parent=1 // pred_check
      _
    $region11: #{tpu_custom_call.1} parent=1 // pred_check_branch
      %51 = sbr.rel (0) target = $region13
    $region12: #{tpu_custom_call.1} parent=1 // pred_region
      _
    $region13: #{tpu_custom_call.1} parent=1 // pred_fallthru
      _
    // Predicated region
    $region14: #{tpu_custom_call.1} parent=1 // pred_check
      _
    $region15: #{tpu_custom_call.1} parent=1 // pred_check_branch
      %53 = sbr.rel (0) target = $region17
    $region16: #{tpu_custom_call.1} parent=1 // pred_region
      %s55 = ssub.s32 1024, 1024
      %56 = vsyncadd [#allocation6], %s55
      %s57 = sshll.u32 [#allocation7], 4
      %s58 = int_to_ptr.vmem [resolvable:$true] %s57
      %63 = dma.hbm_to_vmem [thread:$0]  %s3, 1024, %s58, [#allocation6], 64, 64, 4
    $region17: #{tpu_custom_call.1} parent=1 // pred_fallthru
      _
    // Predicated region
    $region18: #{tpu_custom_call.1} parent=1 // pred_check
      _
    $region19: #{tpu_custom_call.1} parent=1 // pred_check_branch
      %65 = sbr.rel (0) target = $region21
    $region20: #{tpu_custom_call.1} parent=1 // pred_region
      _
    $region21: #{tpu_custom_call.1} parent=1 // pred_fallthru
      _
    // Predicated region
    $region22: #{tpu_custom_call.1} parent=1 // pred_check
      _
    $region23: #{tpu_custom_call.1} parent=1 // pred_check_branch
      %67 = sbr.rel (0) target = $region25
    $region24: #{tpu_custom_call.1} parent=1 // pred_region
      %s69 = ssub.s32 1024, 1024
      %70 = vsyncadd [#allocation9], %s69
      %s71 = sshll.u32 [#allocation8], 4
      %s72 = int_to_ptr.vmem [resolvable:$true] %s71
      %77 = dma.hbm_to_vmem [thread:$0]  %s5, 1024, %s72, [#allocation9], 64, 64, 4
    $region25: #{tpu_custom_call.1} parent=1 // pred_fallthru
      _
    // Predicated region
    $region26: #{tpu_custom_call.1} parent=1 // pred_check
      _
    $region27: #{tpu_custom_call.1} parent=1 // pred_check_branch
      %79 = sbr.rel (0) target = $region29
    $region28: #{tpu_custom_call.1} parent=1 // pred_region
      _
    $region29: #{tpu_custom_call.1} parent=1 // pred_fallthru
      _
    // Predicated region
    $region30: #{tpu_custom_call.1} parent=1 // pred_check
      _
    $region31: #{tpu_custom_call.1} parent=1 // pred_check_branch
      %81 = sbr.rel (0) target = $region33
    $region32: #{tpu_custom_call.1} parent=1 // pred_region
      %s83 = ssub.s32 1024, 1024
      %84 = vsyncadd [#allocation9], %s83
      %s85 = sshll.u32 [#allocation10], 4
      %s86 = int_to_ptr.vmem [resolvable:$true] %s85
      %91 = dma.hbm_to_vmem [thread:$0]  %s7, 1024, %s86, [#allocation9], 64, 64, 4
    $region33: #{tpu_custom_call.1} parent=1 // pred_fallthru
      _
    // Predicated region
    $region34: #{tpu_custom_call.1} parent=1 // pred_check
      _
    $region35: #{tpu_custom_call.1} parent=1 // pred_check_branch
      %93 = sbr.rel (0) target = $region37
    $region36: #{tpu_custom_call.1} parent=1 // pred_region
      _
    $region37: #{tpu_custom_call.1} parent=1 // pred_fallthru
      _
    // Predicated region
    $region38: #{tpu_custom_call.1} parent=1 // pred_check
      _
    $region39: #{tpu_custom_call.1} parent=1 // pred_check_branch
      %95 = sbr.rel (0) target = $region41
    $region40: #{tpu_custom_call.1} parent=1 // pred_region
      %s97 = ssub.s32 1024, 1024
      %98 = vsyncadd [#allocation12], %s97
      %s99 = sshll.u32 [#allocation11], 4
      %s100 = int_to_ptr.vmem [resolvable:$true] %s99
      %105 = dma.hbm_to_vmem [thread:$0]  %s9, 1024, %s100, [#allocation12], 64, 64, 4
    $region41: #{tpu_custom_call.1} parent=1 // pred_fallthru
      _
    // Predicated region
    $region42: #{tpu_custom_call.1} parent=1 // pred_check
      _
    $region43: #{tpu_custom_call.1} parent=1 // pred_check_branch
      %107 = sbr.rel (0) target = $region45
    $region44: #{tpu_custom_call.1} parent=1 // pred_region
      _
    $region45: #{tpu_custom_call.1} parent=1 // pred_fallthru
      _
    // Predicated region
    $region46: #{tpu_custom_call.1} parent=1 // pred_check
      _
    $region47: #{tpu_custom_call.1} parent=1 // pred_check_branch
      %109 = sbr.rel (0) target = $region49
    $region48: #{tpu_custom_call.1} parent=1 // pred_region
      %s111 = ssub.s32 1024, 1024
      %112 = vsyncadd [#allocation12], %s111
      %s113 = sshll.u32 [#allocation13], 4
      %s114 = int_to_ptr.vmem [resolvable:$true] %s113
      %119 = dma.hbm_to_vmem [thread:$0]  %s11, 1024, %s114, [#allocation12], 64, 64, 4
    $region49: #{tpu_custom_call.1} parent=1 // pred_fallthru
      _
    // Predicated region
    $region50: #{tpu_custom_call.1} parent=1 // pred_check
      _
    $region51: #{tpu_custom_call.1} parent=1 // pred_check_branch
      %121 = sbr.rel (0) target = $region53
    $region52: #{tpu_custom_call.1} parent=1 // pred_region
      _
    $region53: #{tpu_custom_call.1} parent=1 // pred_fallthru
      _
    // Predicated region
    $region54: #{tpu_custom_call.1} parent=1 // pred_check
      _
    $region55: #{tpu_custom_call.1} parent=1 // pred_check_branch
      %123 = sbr.rel (0) target = $region57
    $region56: #{tpu_custom_call.1} parent=1 // pred_region
      %124 = dma.done [#allocation3], 256
    $region57: #{tpu_custom_call.1} parent=1 // pred_fallthru
      _
    // Predicated region
    $region58: #{tpu_custom_call.1} parent=1 // pred_check
      _
    $region59: #{tpu_custom_call.1} parent=1 // pred_check_branch
      %126 = sbr.rel (0) target = $region61
    $region60: #{tpu_custom_call.1} parent=1 // pred_region
      %127 = dma.done [#allocation6], 1024
    $region61: #{tpu_custom_call.1} parent=1 // pred_fallthru
      _
    // Predicated region
    $region62: #{tpu_custom_call.1} parent=1 // pred_check
      _
    $region63: #{tpu_custom_call.1} parent=1 // pred_check_branch
      %129 = sbr.rel (0) target = $region65
    $region64: #{tpu_custom_call.1} parent=1 // pred_region
      %130 = dma.done [#allocation6], 1024
    $region65: #{tpu_custom_call.1} parent=1 // pred_fallthru
      _
    // Predicated region
    $region66: #{tpu_custom_call.1} parent=1 // pred_check
      _
    $region67: #{tpu_custom_call.1} parent=1 // pred_check_branch
      %132 = sbr.rel (0) target = $region69
    $region68: #{tpu_custom_call.1} parent=1 // pred_region
      %133 = dma.done [#allocation9], 1024
    $region69: #{tpu_custom_call.1} parent=1 // pred_fallthru
      _
    // Predicated region
    $region70: #{tpu_custom_call.1} parent=1 // pred_check
      _
    $region71: #{tpu_custom_call.1} parent=1 // pred_check_branch
      %135 = sbr.rel (0) target = $region73
    $region72: #{tpu_custom_call.1} parent=1 // pred_region
      %136 = dma.done [#allocation9], 1024
    $region73: #{tpu_custom_call.1} parent=1 // pred_fallthru
      _
    // Predicated region
    $region74: #{tpu_custom_call.1} parent=1 // pred_check
      _
    $region75: #{tpu_custom_call.1} parent=1 // pred_check_branch
      %138 = sbr.rel (0) target = $region77
    $region76: #{tpu_custom_call.1} parent=1 // pred_region
      %139 = dma.done [#allocation12], 1024
    $region77: #{tpu_custom_call.1} parent=1 // pred_fallthru
      _
    // Predicated region
    $region78: #{tpu_custom_call.1} parent=1 // pred_check
      _
    $region79: #{tpu_custom_call.1} parent=1 // pred_check_branch
      %141 = sbr.rel (0) target = $region81
    $region80: #{tpu_custom_call.1} parent=1 // pred_region
      %142 = dma.done [#allocation12], 1024
    $region81: #{tpu_custom_call.1} parent=1 // pred_fallthru
      _
    %v144 = vld [vmem:[#allocation2] sm:$0xf]
    %v145 = vld [vmem:[#allocation2 + $0x4] sm:$0xf]
    %v146 = vld [vmem:[#allocation2 + $0x8] sm:$0xf]
    %v147 = vld [vmem:[#allocation2 + $0xc] sm:$0xf]
    %v148 = vld [vmem:[#allocation5] sm:$0xf]
    %v149 = vld [vmem:[#allocation5 + $0x4] sm:$0xf]
    %v150 = vld [vmem:[#allocation5 + $0x8] sm:$0xf]
    %v151 = vld [vmem:[#allocation5 + $0xc] sm:$0xf]
    %v152 = vld [vmem:[#allocation5 + $0x10] sm:$0xf]
    %v153 = vld [vmem:[#allocation5 + $0x14] sm:$0xf]
    %v154 = vld [vmem:[#allocation5 + $0x18] sm:$0xf]
    %v155 = vld [vmem:[#allocation5 + $0x1c] sm:$0xf]
    %v156 = vld [vmem:[#allocation5 + $0x20] sm:$0xf]
    %v157 = vld [vmem:[#allocation5 + $0x24] sm:$0xf]
    %v158 = vld [vmem:[#allocation5 + $0x28] sm:$0xf]
    %v159 = vld [vmem:[#allocation5 + $0x2c] sm:$0xf]
    %v160 = vld [vmem:[#allocation5 + $0x30] sm:$0xf]
    %v161 = vld [vmem:[#allocation5 + $0x34] sm:$0xf]
    %v162 = vld [vmem:[#allocation5 + $0x38] sm:$0xf]
    %v163 = vld [vmem:[#allocation5 + $0x3c] sm:$0xf]
    %v164 = vld [vmem:[%s2] sm:$0x1]
    %v166 = vlaneseq
    %v167 = vshrl.u32 %v166, 7
    %v168 = vsub.s32 0, %v167
    %v169 = vrot.slane %v164, %v168
    %v175 = vunpack.c.l.b16 %v144
    %v176 = vunpack.c.l.b16 %v145
    %v177 = vunpack.c.l.b16 %v146
    %v178 = vunpack.c.l.b16 %v147
    %v179 = vpack.c.b16 %v176, %v175
    %v180 = vpack.c.b16 %v178, %v177
    %v199 = vunpack.c.l.b16 %v148
    %v200 = vunpack.c.l.b16 %v149
    %v201 = vunpack.c.l.b16 %v150
    %v202 = vunpack.c.l.b16 %v151
    %v203 = vunpack.c.l.b16 %v152
    %v204 = vunpack.c.l.b16 %v153
    %v205 = vunpack.c.l.b16 %v154
    %v206 = vunpack.c.l.b16 %v155
    %v207 = vunpack.c.l.b16 %v156
    %v208 = vunpack.c.l.b16 %v157
    %v209 = vunpack.c.l.b16 %v158
    %v210 = vunpack.c.l.b16 %v159
    %v211 = vunpack.c.l.b16 %v160
    %v212 = vunpack.c.l.b16 %v161
    %v213 = vunpack.c.l.b16 %v162
    %v214 = vunpack.c.l.b16 %v163
    %v215 = vpack.c.b16 %v200, %v199
    %v216 = vpack.c.b16 %v202, %v201
    %v217 = vpack.c.b16 %v204, %v203
    %v218 = vpack.c.b16 %v206, %v205
    %v219 = vpack.c.b16 %v208, %v207
    %v220 = vpack.c.b16 %v210, %v209
    %v221 = vpack.c.b16 %v212, %v211
    %v222 = vpack.c.b16 %v214, %v213
    %231 = vmatprep.subr.bf16.mxu0 0
    %232 = vmatpush1.bf16.msra.mxu0 %v215
    %233 = vmatprep.subr.bf16.mxu0 0
    %234 = vmatpush1.bf16.msra.mxu0 %v216
    %235 = vmatprep.subr.bf16.mxu0 0
    %236 = vmatpush1.bf16.msra.mxu0 %v217
    %237 = vmatprep.subr.bf16.mxu0 0
    %238 = vmatpush1.bf16.msra.mxu0 %v218
    %239 = vmatprep.subr.bf16.mxu0 0
    %240 = vmatpush1.bf16.msra.mxu0 %v219
    %241 = vmatprep.subr.bf16.mxu0 0
    %242 = vmatpush1.bf16.msra.mxu0 %v220
    %243 = vmatprep.subr.bf16.mxu0 0
    %244 = vmatpush1.bf16.msra.mxu0 %v221
    %245 = vmatprep.subr.bf16.mxu0 0
    %246 = vmatpush1.bf16.msra.mxu0 %v222
    %247 = vmatprep.subr.bf16.mxu0 0
    %248 = vmatpush1.bf16.msra.mxu0 0
    %249 = vmatprep.subr.bf16.mxu0 0
    %250 = vmatpush1.bf16.msra.mxu0 0
    %251 = vmatprep.subr.bf16.mxu0 0
    %252 = vmatpush1.bf16.msra.mxu0 0
    %253 = vmatprep.subr.bf16.mxu0 0
    %254 = vmatpush1.bf16.msra.mxu0 0
    %255 = vmatprep.subr.bf16.mxu0 0
    %256 = vmatpush1.bf16.msra.mxu0 0
    %257 = vmatprep.subr.bf16.mxu0 0
    %258 = vmatpush1.bf16.msra.mxu0 0
    %259 = vmatprep.subr.bf16.mxu0 0
    %260 = vmatpush1.bf16.msra.mxu0 0
    %261 = vmatprep.subr.bf16.mxu0 0
    %262 = vmatpush1.bf16.msra.mxu0 0
    %263 = vmatprep.mubr.bf16.mxu0 0
    %264 = vmatmul.mubr.bf16.gmra.mrb[0].mxu0 %v179
    %v265 = vpop.f32.mrb[0].mxu0
    %v266 = vadd.f32 %v169, %v265
    %v267 = vpop.f32.mrb[0].mxu0
    %v268 = vpop.f32.mrb[0].mxu0
    %v269 = vadd.f32 %v169, %v268
    %v270 = vpop.f32.mrb[0].mxu0
    %271 = vmatprep.mubr.bf16.mxu0 0
    %272 = vmatmul.mubr.bf16.gmra.mrb[0].mxu0 %v180
    %v273 = vpop.f32.mrb[0].mxu0
    %v274 = vadd.f32 %v169, %v273
    %v275 = vpop.f32.mrb[0].mxu0
    %v276 = vpop.f32.mrb[0].mxu0
    %v277 = vadd.f32 %v169, %v276
    %v278 = vpop.f32.mrb[0].mxu0
    %279 = vdwg.mxu0
    %v280 = vmax.f32 %v266, 0.0
    %v281 = vmax.f32 %v269, 0.0
    %v282 = vmax.f32 %v274, 0.0
    %v283 = vmax.f32 %v277, 0.0
    %v284 = vpack.c.bf16 %v281, %v280
    %v285 = vpack.c.bf16 %v283, %v282
    %v286 = vld [vmem:[#allocation7] sm:$0xf]
    %v287 = vld [vmem:[#allocation7 + $0x4] sm:$0xf]
    %v288 = vld [vmem:[#allocation7 + $0x8] sm:$0xf]
    %v289 = vld [vmem:[#allocation7 + $0xc] sm:$0xf]
    %v290 = vld [vmem:[#allocation7 + $0x10] sm:$0xf]
    %v291 = vld [vmem:[#allocation7 + $0x14] sm:$0xf]
    %v292 = vld [vmem:[#allocation7 + $0x18] sm:$0xf]
    %v293 = vld [vmem:[#allocation7 + $0x1c] sm:$0xf]
    %v294 = vld [vmem:[#allocation7 + $0x20] sm:$0xf]
    %v295 = vld [vmem:[#allocation7 + $0x24] sm:$0xf]
    %v296 = vld [vmem:[#allocation7 + $0x28] sm:$0xf]
    %v297 = vld [vmem:[#allocation7 + $0x2c] sm:$0xf]
    %v298 = vld [vmem:[#allocation7 + $0x30] sm:$0xf]
    %v299 = vld [vmem:[#allocation7 + $0x34] sm:$0xf]
    %v300 = vld [vmem:[#allocation7 + $0x38] sm:$0xf]
    %v301 = vld [vmem:[#allocation7 + $0x3c] sm:$0xf]
    %v302 = vld [vmem:[%s4] sm:$0x1]
    %v304 = vlaneseq
    %v305 = vshrl.u32 %v304, 7
    %v306 = vsub.s32 0, %v305
    %v307 = vrot.slane %v302, %v306
    %v325 = vunpack.c.l.b16 %v286
    %v326 = vunpack.c.l.b16 %v287
    %v327 = vunpack.c.l.b16 %v288
    %v328 = vunpack.c.l.b16 %v289
    %v329 = vunpack.c.l.b16 %v290
    %v330 = vunpack.c.l.b16 %v291
    %v331 = vunpack.c.l.b16 %v292
    %v332 = vunpack.c.l.b16 %v293
    %v333 = vunpack.c.l.b16 %v294
    %v334 = vunpack.c.l.b16 %v295
    %v335 = vunpack.c.l.b16 %v296
    %v336 = vunpack.c.l.b16 %v297
    %v337 = vunpack.c.l.b16 %v298
    %v338 = vunpack.c.l.b16 %v299
    %v339 = vunpack.c.l.b16 %v300
    %v340 = vunpack.c.l.b16 %v301
    %v341 = vpack.c.b16 %v326, %v325
    %v342 = vpack.c.b16 %v328, %v327
    %v343 = vpack.c.b16 %v330, %v329
    %v344 = vpack.c.b16 %v332, %v331
    %v345 = vpack.c.b16 %v334, %v333
    %v346 = vpack.c.b16 %v336, %v335
    %v347 = vpack.c.b16 %v338, %v337
    %v348 = vpack.c.b16 %v340, %v339
    %357 = vmatprep.subr.bf16.mxu0 0
    %358 = vmatpush1.bf16.msra.mxu0 %v341
    %359 = vmatprep.subr.bf16.mxu0 0
    %360 = vmatpush1.bf16.msra.mxu0 %v342
    %361 = vmatprep.subr.bf16.mxu0 0
    %362 = vmatpush1.bf16.msra.mxu0 %v343
    %363 = vmatprep.subr.bf16.mxu0 0
    %364 = vmatpush1.bf16.msra.mxu0 %v344
    %365 = vmatprep.subr.bf16.mxu0 0
    %366 = vmatpush1.bf16.msra.mxu0 %v345
    %367 = vmatprep.subr.bf16.mxu0 0
    %368 = vmatpush1.bf16.msra.mxu0 %v346
    %369 = vmatprep.subr.bf16.mxu0 0
    %370 = vmatpush1.bf16.msra.mxu0 %v347
    %371 = vmatprep.subr.bf16.mxu0 0
    %372 = vmatpush1.bf16.msra.mxu0 %v348
    %373 = vmatprep.subr.bf16.mxu0 0
    %374 = vmatpush1.bf16.msra.mxu0 0
    %375 = vmatprep.subr.bf16.mxu0 0
    %376 = vmatpush1.bf16.msra.mxu0 0
    %377 = vmatprep.subr.bf16.mxu0 0
    %378 = vmatpush1.bf16.msra.mxu0 0
    %379 = vmatprep.subr.bf16.mxu0 0
    %380 = vmatpush1.bf16.msra.mxu0 0
    %381 = vmatprep.subr.bf16.mxu0 0
    %382 = vmatpush1.bf16.msra.mxu0 0
    %383 = vmatprep.subr.bf16.mxu0 0
    %384 = vmatpush1.bf16.msra.mxu0 0
    %385 = vmatprep.subr.bf16.mxu0 0
    %386 = vmatpush1.bf16.msra.mxu0 0
    %387 = vmatprep.subr.bf16.mxu0 0
    %388 = vmatpush1.bf16.msra.mxu0 0
    %389 = vmatprep.mubr.bf16.mxu0 0
    %390 = vmatmul.mubr.bf16.gmra.mrb[0].mxu0 %v284
    %v391 = vpop.f32.mrb[0].mxu0
    %v392 = vadd.f32 %v307, %v391
    %v393 = vpop.f32.mrb[0].mxu0
    %v394 = vpop.f32.mrb[0].mxu0
    %v395 = vadd.f32 %v307, %v394
    %v396 = vpop.f32.mrb[0].mxu0
    %397 = vmatprep.mubr.bf16.mxu0 0
    %398 = vmatmul.mubr.bf16.gmra.mrb[0].mxu0 %v285
    %v399 = vpop.f32.mrb[0].mxu0
    %v400 = vadd.f32 %v307, %v399
    %v401 = vpop.f32.mrb[0].mxu0
    %v402 = vpop.f32.mrb[0].mxu0
    %v403 = vadd.f32 %v307, %v402
    %v404 = vpop.f32.mrb[0].mxu0
    %405 = vdwg.mxu0
    %v406 = vmax.f32 %v392, 0.0
    %v407 = vmax.f32 %v395, 0.0
    %v408 = vmax.f32 %v400, 0.0
    %v409 = vmax.f32 %v403, 0.0
    %v410 = vpack.c.bf16 %v407, %v406
    %v411 = vpack.c.bf16 %v409, %v408
    %v412 = vld [vmem:[#allocation8] sm:$0xf]
    %v413 = vld [vmem:[#allocation8 + $0x4] sm:$0xf]
    %v414 = vld [vmem:[#allocation8 + $0x8] sm:$0xf]
    %v415 = vld [vmem:[#allocation8 + $0xc] sm:$0xf]
    %v416 = vld [vmem:[#allocation8 + $0x10] sm:$0xf]
    %v417 = vld [vmem:[#allocation8 + $0x14] sm:$0xf]
    %v418 = vld [vmem:[#allocation8 + $0x18] sm:$0xf]
    %v419 = vld [vmem:[#allocation8 + $0x1c] sm:$0xf]
    %v420 = vld [vmem:[#allocation8 + $0x20] sm:$0xf]
    %v421 = vld [vmem:[#allocation8 + $0x24] sm:$0xf]
    %v422 = vld [vmem:[#allocation8 + $0x28] sm:$0xf]
    %v423 = vld [vmem:[#allocation8 + $0x2c] sm:$0xf]
    %v424 = vld [vmem:[#allocation8 + $0x30] sm:$0xf]
    %v425 = vld [vmem:[#allocation8 + $0x34] sm:$0xf]
    %v426 = vld [vmem:[#allocation8 + $0x38] sm:$0xf]
    %v427 = vld [vmem:[#allocation8 + $0x3c] sm:$0xf]
    %v428 = vld [vmem:[%s6] sm:$0x1]
    %v430 = vlaneseq
    %v431 = vshrl.u32 %v430, 7
    %v432 = vsub.s32 0, %v431
    %v433 = vrot.slane %v428, %v432
    %v451 = vunpack.c.l.b16 %v412
    %v452 = vunpack.c.l.b16 %v413
    %v453 = vunpack.c.l.b16 %v414
    %v454 = vunpack.c.l.b16 %v415
    %v455 = vunpack.c.l.b16 %v416
    %v456 = vunpack.c.l.b16 %v417
    %v457 = vunpack.c.l.b16 %v418
    %v458 = vunpack.c.l.b16 %v419
    %v459 = vunpack.c.l.b16 %v420
    %v460 = vunpack.c.l.b16 %v421
    %v461 = vunpack.c.l.b16 %v422
    %v462 = vunpack.c.l.b16 %v423
    %v463 = vunpack.c.l.b16 %v424
    %v464 = vunpack.c.l.b16 %v425
    %v465 = vunpack.c.l.b16 %v426
    %v466 = vunpack.c.l.b16 %v427
    %v467 = vpack.c.b16 %v452, %v451
    %v468 = vpack.c.b16 %v454, %v453
    %v469 = vpack.c.b16 %v456, %v455
    %v470 = vpack.c.b16 %v458, %v457
    %v471 = vpack.c.b16 %v460, %v459
    %v472 = vpack.c.b16 %v462, %v461
    %v473 = vpack.c.b16 %v464, %v463
    %v474 = vpack.c.b16 %v466, %v465
    %483 = vmatprep.subr.bf16.mxu0 0
    %484 = vmatpush1.bf16.msra.mxu0 %v467
    %485 = vmatprep.subr.bf16.mxu0 0
    %486 = vmatpush1.bf16.msra.mxu0 %v468
    %487 = vmatprep.subr.bf16.mxu0 0
    %488 = vmatpush1.bf16.msra.mxu0 %v469
    %489 = vmatprep.subr.bf16.mxu0 0
    %490 = vmatpush1.bf16.msra.mxu0 %v470
    %491 = vmatprep.subr.bf16.mxu0 0
    %492 = vmatpush1.bf16.msra.mxu0 %v471
    %493 = vmatprep.subr.bf16.mxu0 0
    %494 = vmatpush1.bf16.msra.mxu0 %v472
    %495 = vmatprep.subr.bf16.mxu0 0
    %496 = vmatpush1.bf16.msra.mxu0 %v473
    %497 = vmatprep.subr.bf16.mxu0 0
    %498 = vmatpush1.bf16.msra.mxu0 %v474
    %499 = vmatprep.subr.bf16.mxu0 0
    %500 = vmatpush1.bf16.msra.mxu0 0
    %501 = vmatprep.subr.bf16.mxu0 0
    %502 = vmatpush1.bf16.msra.mxu0 0
    %503 = vmatprep.subr.bf16.mxu0 0
    %504 = vmatpush1.bf16.msra.mxu0 0
    %505 = vmatprep.subr.bf16.mxu0 0
    %506 = vmatpush1.bf16.msra.mxu0 0
    %507 = vmatprep.subr.bf16.mxu0 0
    %508 = vmatpush1.bf16.msra.mxu0 0
    %509 = vmatprep.subr.bf16.mxu0 0
    %510 = vmatpush1.bf16.msra.mxu0 0
    %511 = vmatprep.subr.bf16.mxu0 0
    %512 = vmatpush1.bf16.msra.mxu0 0
    %513 = vmatprep.subr.bf16.mxu0 0
    %514 = vmatpush1.bf16.msra.mxu0 0
    %515 = vmatprep.mubr.bf16.mxu0 0
    %516 = vmatmul.mubr.bf16.gmra.mrb[0].mxu0 %v410
    %v517 = vpop.f32.mrb[0].mxu0
    %v518 = vadd.f32 %v433, %v517
    %v519 = vpop.f32.mrb[0].mxu0
    %v520 = vpop.f32.mrb[0].mxu0
    %v521 = vadd.f32 %v433, %v520
    %v522 = vpop.f32.mrb[0].mxu0
    %523 = vmatprep.mubr.bf16.mxu0 0
    %524 = vmatmul.mubr.bf16.gmra.mrb[0].mxu0 %v411
    %v525 = vpop.f32.mrb[0].mxu0
    %v526 = vadd.f32 %v433, %v525
    %v527 = vpop.f32.mrb[0].mxu0
    %v528 = vpop.f32.mrb[0].mxu0
    %v529 = vadd.f32 %v433, %v528
    %v530 = vpop.f32.mrb[0].mxu0
    %531 = vdwg.mxu0
    %532 = vst [vmem:[#allocation14] sm:$0xff] %v518
    %533 = vst [vmem:[#allocation14 + $0x8] sm:$0xff] %v521
    %534 = vst [vmem:[#allocation14 + $0x10] sm:$0xff] %v526
    %535 = vst [vmem:[#allocation14 + $0x18] sm:$0xff] %v529
    %v536 = vld [vmem:[#allocation10] sm:$0xf]
    %v537 = vld [vmem:[#allocation10 + $0x4] sm:$0xf]
    %v538 = vld [vmem:[#allocation10 + $0x8] sm:$0xf]
    %v539 = vld [vmem:[#allocation10 + $0xc] sm:$0xf]
    %v540 = vld [vmem:[#allocation10 + $0x10] sm:$0xf]
    %v541 = vld [vmem:[#allocation10 + $0x14] sm:$0xf]
    %v542 = vld [vmem:[#allocation10 + $0x18] sm:$0xf]
    %v543 = vld [vmem:[#allocation10 + $0x1c] sm:$0xf]
    %v544 = vld [vmem:[#allocation10 + $0x20] sm:$0xf]
    %v545 = vld [vmem:[#allocation10 + $0x24] sm:$0xf]
    %v546 = vld [vmem:[#allocation10 + $0x28] sm:$0xf]
    %v547 = vld [vmem:[#allocation10 + $0x2c] sm:$0xf]
    %v548 = vld [vmem:[#allocation10 + $0x30] sm:$0xf]
    %v549 = vld [vmem:[#allocation10 + $0x34] sm:$0xf]
    %v550 = vld [vmem:[#allocation10 + $0x38] sm:$0xf]
    %v551 = vld [vmem:[#allocation10 + $0x3c] sm:$0xf]
    %v552 = vld [vmem:[%s8] sm:$0x1]
    %v553 = vpack.c.bf16 %v521, %v518
    %v554 = vpack.c.bf16 %v529, %v526
    %v556 = vlaneseq
    %v557 = vshrl.u32 %v556, 7
    %v558 = vsub.s32 0, %v557
    %v559 = vrot.slane %v552, %v558
    %v577 = vunpack.c.l.b16 %v536
    %v578 = vunpack.c.l.b16 %v537
    %v579 = vunpack.c.l.b16 %v538
    %v580 = vunpack.c.l.b16 %v539
    %v581 = vunpack.c.l.b16 %v540
    %v582 = vunpack.c.l.b16 %v541
    %v583 = vunpack.c.l.b16 %v542
    %v584 = vunpack.c.l.b16 %v543
    %v585 = vunpack.c.l.b16 %v544
    %v586 = vunpack.c.l.b16 %v545
    %v587 = vunpack.c.l.b16 %v546
    %v588 = vunpack.c.l.b16 %v547
    %v589 = vunpack.c.l.b16 %v548
    %v590 = vunpack.c.l.b16 %v549
    %v591 = vunpack.c.l.b16 %v550
    %v592 = vunpack.c.l.b16 %v551
    %v593 = vpack.c.b16 %v578, %v577
    %v594 = vpack.c.b16 %v580, %v579
    %v595 = vpack.c.b16 %v582, %v581
    %v596 = vpack.c.b16 %v584, %v583
    %v597 = vpack.c.b16 %v586, %v585
    %v598 = vpack.c.b16 %v588, %v587
    %v599 = vpack.c.b16 %v590, %v589
    %v600 = vpack.c.b16 %v592, %v591
    %609 = vmatprep.subr.bf16.mxu0 0
    %610 = vmatpush1.bf16.msra.mxu0 %v593
    %611 = vmatprep.subr.bf16.mxu0 0
    %612 = vmatpush1.bf16.msra.mxu0 %v594
    %613 = vmatprep.subr.bf16.mxu0 0
    %614 = vmatpush1.bf16.msra.mxu0 %v595
    %615 = vmatprep.subr.bf16.mxu0 0
    %616 = vmatpush1.bf16.msra.mxu0 %v596
    %617 = vmatprep.subr.bf16.mxu0 0
    %618 = vmatpush1.bf16.msra.mxu0 %v597
    %619 = vmatprep.subr.bf16.mxu0 0
    %620 = vmatpush1.bf16.msra.mxu0 %v598
    %621 = vmatprep.subr.bf16.mxu0 0
    %622 = vmatpush1.bf16.msra.mxu0 %v599
    %623 = vmatprep.subr.bf16.mxu0 0
    %624 = vmatpush1.bf16.msra.mxu0 %v600
    %625 = vmatprep.subr.bf16.mxu0 0
    %626 = vmatpush1.bf16.msra.mxu0 0
    %627 = vmatprep.subr.bf16.mxu0 0
    %628 = vmatpush1.bf16.msra.mxu0 0
    %629 = vmatprep.subr.bf16.mxu0 0
    %630 = vmatpush1.bf16.msra.mxu0 0
    %631 = vmatprep.subr.bf16.mxu0 0
    %632 = vmatpush1.bf16.msra.mxu0 0
    %633 = vmatprep.subr.bf16.mxu0 0
    %634 = vmatpush1.bf16.msra.mxu0 0
    %635 = vmatprep.subr.bf16.mxu0 0
    %636 = vmatpush1.bf16.msra.mxu0 0
    %637 = vmatprep.subr.bf16.mxu0 0
    %638 = vmatpush1.bf16.msra.mxu0 0
    %639 = vmatprep.subr.bf16.mxu0 0
    %640 = vmatpush1.bf16.msra.mxu0 0
    %641 = vmatprep.mubr.bf16.mxu0 0
    %642 = vmatmul.mubr.bf16.gmra.mrb[0].mxu0 %v553
    %v643 = vpop.f32.mrb[0].mxu0
    %v644 = vadd.f32 %v559, %v643
    %v645 = vpop.f32.mrb[0].mxu0
    %v646 = vpop.f32.mrb[0].mxu0
    %v647 = vadd.f32 %v559, %v646
    %v648 = vpop.f32.mrb[0].mxu0
    %649 = vmatprep.mubr.bf16.mxu0 0
    %650 = vmatmul.mubr.bf16.gmra.mrb[0].mxu0 %v554
    %v651 = vpop.f32.mrb[0].mxu0
    %v652 = vadd.f32 %v559, %v651
    %v653 = vpop.f32.mrb[0].mxu0
    %v654 = vpop.f32.mrb[0].mxu0
    %v655 = vadd.f32 %v559, %v654
    %v656 = vpop.f32.mrb[0].mxu0
    %657 = vdwg.mxu0
    %v658 = vmax.f32 %v644, 0.0
    %v659 = vmax.f32 %v647, 0.0
    %v660 = vmax.f32 %v652, 0.0
    %v661 = vmax.f32 %v655, 0.0
    %v662 = vpack.c.bf16 %v659, %v658
    %v663 = vpack.c.bf16 %v661, %v660
    %v664 = vld [vmem:[#allocation11] sm:$0xf]
    %v665 = vld [vmem:[#allocation11 + $0x4] sm:$0xf]
    %v666 = vld [vmem:[#allocation11 + $0x8] sm:$0xf]
    %v667 = vld [vmem:[#allocation11 + $0xc] sm:$0xf]
    %v668 = vld [vmem:[#allocation11 + $0x10] sm:$0xf]
    %v669 = vld [vmem:[#allocation11 + $0x14] sm:$0xf]
    %v670 = vld [vmem:[#allocation11 + $0x18] sm:$0xf]
    %v671 = vld [vmem:[#allocation11 + $0x1c] sm:$0xf]
    %v672 = vld [vmem:[#allocation11 + $0x20] sm:$0xf]
    %v673 = vld [vmem:[#allocation11 + $0x24] sm:$0xf]
    %v674 = vld [vmem:[#allocation11 + $0x28] sm:$0xf]
    %v675 = vld [vmem:[#allocation11 + $0x2c] sm:$0xf]
    %v676 = vld [vmem:[#allocation11 + $0x30] sm:$0xf]
    %v677 = vld [vmem:[#allocation11 + $0x34] sm:$0xf]
    %v678 = vld [vmem:[#allocation11 + $0x38] sm:$0xf]
    %v679 = vld [vmem:[#allocation11 + $0x3c] sm:$0xf]
    %v680 = vld [vmem:[%s10] sm:$0x1]
    %v682 = vlaneseq
    %v683 = vshrl.u32 %v682, 7
    %v684 = vsub.s32 0, %v683
    %v685 = vrot.slane %v680, %v684
    %v703 = vunpack.c.l.b16 %v664
    %v704 = vunpack.c.l.b16 %v665
    %v705 = vunpack.c.l.b16 %v666
    %v706 = vunpack.c.l.b16 %v667
    %v707 = vunpack.c.l.b16 %v668
    %v708 = vunpack.c.l.b16 %v669
    %v709 = vunpack.c.l.b16 %v670
    %v710 = vunpack.c.l.b16 %v671
    %v711 = vunpack.c.l.b16 %v672
    %v712 = vunpack.c.l.b16 %v673
    %v713 = vunpack.c.l.b16 %v674
    %v714 = vunpack.c.l.b16 %v675
    %v715 = vunpack.c.l.b16 %v676
    %v716 = vunpack.c.l.b16 %v677
    %v717 = vunpack.c.l.b16 %v678
    %v718 = vunpack.c.l.b16 %v679
    %v719 = vpack.c.b16 %v704, %v703
    %v720 = vpack.c.b16 %v706, %v705
    %v721 = vpack.c.b16 %v708, %v707
    %v722 = vpack.c.b16 %v710, %v709
    %v723 = vpack.c.b16 %v712, %v711
    %v724 = vpack.c.b16 %v714, %v713
    %v725 = vpack.c.b16 %v716, %v715
    %v726 = vpack.c.b16 %v718, %v717
    %735 = vmatprep.subr.bf16.mxu0 0
    %736 = vmatpush1.bf16.msra.mxu0 %v719
    %737 = vmatprep.subr.bf16.mxu0 0
    %738 = vmatpush1.bf16.msra.mxu0 %v720
    %739 = vmatprep.subr.bf16.mxu0 0
    %740 = vmatpush1.bf16.msra.mxu0 %v721
    %741 = vmatprep.subr.bf16.mxu0 0
    %742 = vmatpush1.bf16.msra.mxu0 %v722
    %743 = vmatprep.subr.bf16.mxu0 0
    %744 = vmatpush1.bf16.msra.mxu0 %v723
    %745 = vmatprep.subr.bf16.mxu0 0
    %746 = vmatpush1.bf16.msra.mxu0 %v724
    %747 = vmatprep.subr.bf16.mxu0 0
    %748 = vmatpush1.bf16.msra.mxu0 %v725
    %749 = vmatprep.subr.bf16.mxu0 0
    %750 = vmatpush1.bf16.msra.mxu0 %v726
    %751 = vmatprep.subr.bf16.mxu0 0
    %752 = vmatpush1.bf16.msra.mxu0 0
    %753 = vmatprep.subr.bf16.mxu0 0
    %754 = vmatpush1.bf16.msra.mxu0 0
    %755 = vmatprep.subr.bf16.mxu0 0
    %756 = vmatpush1.bf16.msra.mxu0 0
    %757 = vmatprep.subr.bf16.mxu0 0
    %758 = vmatpush1.bf16.msra.mxu0 0
    %759 = vmatprep.subr.bf16.mxu0 0
    %760 = vmatpush1.bf16.msra.mxu0 0
    %761 = vmatprep.subr.bf16.mxu0 0
    %762 = vmatpush1.bf16.msra.mxu0 0
    %763 = vmatprep.subr.bf16.mxu0 0
    %764 = vmatpush1.bf16.msra.mxu0 0
    %765 = vmatprep.subr.bf16.mxu0 0
    %766 = vmatpush1.bf16.msra.mxu0 0
    %767 = vmatprep.mubr.bf16.mxu0 0
    %768 = vmatmul.mubr.bf16.gmra.mrb[0].mxu0 %v662
    %v769 = vpop.f32.mrb[0].mxu0
    %v770 = vadd.f32 %v685, %v769
    %v771 = vpop.f32.mrb[0].mxu0
    %v772 = vpop.f32.mrb[0].mxu0
    %v773 = vadd.f32 %v685, %v772
    %v774 = vpop.f32.mrb[0].mxu0
    %775 = vmatprep.mubr.bf16.mxu0 0
    %776 = vmatmul.mubr.bf16.gmra.mrb[0].mxu0 %v663
    %v777 = vpop.f32.mrb[0].mxu0
    %v778 = vadd.f32 %v685, %v777
    %v779 = vpop.f32.mrb[0].mxu0
    %v780 = vpop.f32.mrb[0].mxu0
    %v781 = vadd.f32 %v685, %v780
    %v782 = vpop.f32.mrb[0].mxu0
    %783 = vdwg.mxu0
    %v784 = vmax.f32 %v770, 0.0
    %v785 = vmax.f32 %v773, 0.0
    %v786 = vmax.f32 %v778, 0.0
    %v787 = vmax.f32 %v781, 0.0
    %v788 = vpack.c.bf16 %v785, %v784
    %v789 = vpack.c.bf16 %v787, %v786
    %v790 = vld [vmem:[#allocation13] sm:$0xf]
    %v791 = vld [vmem:[#allocation13 + $0x4] sm:$0xf]
    %v792 = vld [vmem:[#allocation13 + $0x8] sm:$0xf]
    %v793 = vld [vmem:[#allocation13 + $0xc] sm:$0xf]
    %v794 = vld [vmem:[#allocation13 + $0x10] sm:$0xf]
    %v795 = vld [vmem:[#allocation13 + $0x14] sm:$0xf]
    %v796 = vld [vmem:[#allocation13 + $0x18] sm:$0xf]
    %v797 = vld [vmem:[#allocation13 + $0x1c] sm:$0xf]
    %v798 = vld [vmem:[#allocation13 + $0x20] sm:$0xf]
    %v799 = vld [vmem:[#allocation13 + $0x24] sm:$0xf]
    %v800 = vld [vmem:[#allocation13 + $0x28] sm:$0xf]
    %v801 = vld [vmem:[#allocation13 + $0x2c] sm:$0xf]
    %v802 = vld [vmem:[#allocation13 + $0x30] sm:$0xf]
    %v803 = vld [vmem:[#allocation13 + $0x34] sm:$0xf]
    %v804 = vld [vmem:[#allocation13 + $0x38] sm:$0xf]
    %v805 = vld [vmem:[#allocation13 + $0x3c] sm:$0xf]
    %v806 = vld [vmem:[%s12] sm:$0x1]
    %v808 = vlaneseq
    %v809 = vshrl.u32 %v808, 7
    %v810 = vsub.s32 0, %v809
    %v811 = vrot.slane %v806, %v810
    %v829 = vunpack.c.l.b16 %v790
    %v830 = vunpack.c.l.b16 %v791
    %v831 = vunpack.c.l.b16 %v792
    %v832 = vunpack.c.l.b16 %v793
    %v833 = vunpack.c.l.b16 %v794
    %v834 = vunpack.c.l.b16 %v795
    %v835 = vunpack.c.l.b16 %v796
    %v836 = vunpack.c.l.b16 %v797
    %v837 = vunpack.c.l.b16 %v798
    %v838 = vunpack.c.l.b16 %v799
    %v839 = vunpack.c.l.b16 %v800
    %v840 = vunpack.c.l.b16 %v801
    %v841 = vunpack.c.l.b16 %v802
    %v842 = vunpack.c.l.b16 %v803
    %v843 = vunpack.c.l.b16 %v804
    %v844 = vunpack.c.l.b16 %v805
    %v845 = vpack.c.b16 %v830, %v829
    %v846 = vpack.c.b16 %v832, %v831
    %v847 = vpack.c.b16 %v834, %v833
    %v848 = vpack.c.b16 %v836, %v835
    %v849 = vpack.c.b16 %v838, %v837
    %v850 = vpack.c.b16 %v840, %v839
    %v851 = vpack.c.b16 %v842, %v841
    %v852 = vpack.c.b16 %v844, %v843
    %861 = vmatprep.subr.bf16.mxu0 0
    %862 = vmatpush1.bf16.msra.mxu0 %v845
    %863 = vmatprep.subr.bf16.mxu0 0
    %864 = vmatpush1.bf16.msra.mxu0 %v846
    %865 = vmatprep.subr.bf16.mxu0 0
    %866 = vmatpush1.bf16.msra.mxu0 %v847
    %867 = vmatprep.subr.bf16.mxu0 0
    %868 = vmatpush1.bf16.msra.mxu0 %v848
    %869 = vmatprep.subr.bf16.mxu0 0
    %870 = vmatpush1.bf16.msra.mxu0 %v849
    %871 = vmatprep.subr.bf16.mxu0 0
    %872 = vmatpush1.bf16.msra.mxu0 %v850
    %873 = vmatprep.subr.bf16.mxu0 0
    %874 = vmatpush1.bf16.msra.mxu0 %v851
    %875 = vmatprep.subr.bf16.mxu0 0
    %876 = vmatpush1.bf16.msra.mxu0 %v852
    %877 = vmatprep.subr.bf16.mxu0 0
    %878 = vmatpush1.bf16.msra.mxu0 0
    %879 = vmatprep.subr.bf16.mxu0 0
    %880 = vmatpush1.bf16.msra.mxu0 0
    %881 = vmatprep.subr.bf16.mxu0 0
    %882 = vmatpush1.bf16.msra.mxu0 0
    %883 = vmatprep.subr.bf16.mxu0 0
    %884 = vmatpush1.bf16.msra.mxu0 0
    %885 = vmatprep.subr.bf16.mxu0 0
    %886 = vmatpush1.bf16.msra.mxu0 0
    %887 = vmatprep.subr.bf16.mxu0 0
    %888 = vmatpush1.bf16.msra.mxu0 0
    %889 = vmatprep.subr.bf16.mxu0 0
    %890 = vmatpush1.bf16.msra.mxu0 0
    %891 = vmatprep.subr.bf16.mxu0 0
    %892 = vmatpush1.bf16.msra.mxu0 0
    %893 = vmatprep.mubr.bf16.mxu0 0
    %894 = vmatmul.mubr.bf16.gmra.mrb[0].mxu0 %v788
    %v895 = vpop.f32.mrb[0].mxu0
    %v896 = vadd.f32 %v811, %v895
    %v897 = vpop.f32.mrb[0].mxu0
    %v898 = vpop.f32.mrb[0].mxu0
    %v899 = vadd.f32 %v811, %v898
    %v900 = vpop.f32.mrb[0].mxu0
    %901 = vmatprep.mubr.bf16.mxu0 0
    %902 = vmatmul.mubr.bf16.gmra.mrb[0].mxu0 %v789
    %v903 = vpop.f32.mrb[0].mxu0
    %v904 = vadd.f32 %v811, %v903
    %v905 = vpop.f32.mrb[0].mxu0
    %v906 = vpop.f32.mrb[0].mxu0
    %v907 = vadd.f32 %v811, %v906
    %v908 = vpop.f32.mrb[0].mxu0
    %909 = vdwg.mxu0
    %910 = vst [vmem:[#allocation15] sm:$0xff] %v896
    %911 = vst [vmem:[#allocation15 + $0x8] sm:$0xff] %v899
    %912 = vst [vmem:[#allocation15 + $0x10] sm:$0xff] %v904
    %913 = vst [vmem:[#allocation15 + $0x18] sm:$0xff] %v907
    // Predicated region
    $region82: #{tpu_custom_call.1} parent=1 // pred_check
      _
    $region83: #{tpu_custom_call.1} parent=1 // pred_check_branch
      %915 = sbr.rel (0) target = $region85
    $region84: #{tpu_custom_call.1} parent=1 // pred_region
      %s917 = ssub.s32 512, 512
      %918 = vsyncadd [#allocation4], %s917
      %s919 = sshll.u32 [#allocation14], 4
      %s920 = int_to_ptr.vmem [resolvable:$true] %s919
      %925 = dma.vmem_to_hbm [thread:$0]  %s920, 512, %s13, [#allocation4], 128, 128, 8
    $region85: #{tpu_custom_call.1} parent=1 // pred_fallthru
      _
    // Predicated region
    $region86: #{tpu_custom_call.1} parent=1 // pred_check
      _
    $region87: #{tpu_custom_call.1} parent=1 // pred_check_branch
      %927 = sbr.rel (0) target = $region89
    $region88: #{tpu_custom_call.1} parent=1 // pred_region
      %s929 = ssub.s32 512, 512
      %930 = vsyncadd [#allocation16], %s929
      %s931 = sshll.u32 [#allocation15], 4
      %s932 = int_to_ptr.vmem [resolvable:$true] %s931
      %937 = dma.vmem_to_hbm [thread:$0]  %s932, 512, %s14, [#allocation16], 128, 128, 8
    $region89: #{tpu_custom_call.1} parent=1 // pred_fallthru
      _
    // Predicated region
    $region90: #{tpu_custom_call.1} parent=1 // pred_check
      _
    $region91: #{tpu_custom_call.1} parent=1 // pred_check_branch
      %939 = sbr.rel (0) target = $region93
    $region92: #{tpu_custom_call.1} parent=1 // pred_region
      %940 = dma.done [#allocation4], 512
    $region93: #{tpu_custom_call.1} parent=1 // pred_fallthru
      _
    // Predicated region
    $region94: #{tpu_custom_call.1} parent=1 // pred_check
      _
    $region95: #{tpu_custom_call.1} parent=1 // pred_check_branch
      %942 = sbr.rel (0) target = $region97
    $region96: #{tpu_custom_call.1} parent=1 // pred_region
      %943 = dma.done [#allocation16], 512
    $region97: #{tpu_custom_call.1} parent=1 // pred_fallthru
      _
    %944 = vsyncpa [#allocation3], 1
    %945 = vsyncpa [#allocation6], 1
    %946 = vsyncpa [#allocation9], 1
    %947 = vsyncpa [#allocation12], 1
    %948 = vsyncpa [#allocation4], 1
    %949 = vsyncpa [#allocation16], 1

</llo_original>
